<compile_context>
chip_gen: v7x
topology: tpu7x:2x2x1
jax: 0.10.0
libtpu: 0.0.40
codegen_flags: <defaults>
</compile_context>

<pallas_src>
import functools
import math

import jax
import jax.numpy as jnp
from jax.experimental import pallas as pl
from jax.experimental.pallas import tpu as pltpu


# ----------------------------------------------------------------------------- helpers
def _layernorm(x, g, b, eps=1e-5):
    mu = jnp.mean(x, axis=-1, keepdims=True)
    var = jnp.mean((x - mu) ** 2, axis=-1, keepdims=True)
    return (x - mu) * jax.lax.rsqrt(var + eps) * g + b


# ----------------------------------------------------------------- fused whole-network kernel
def _fused_kernel(a_ref, x_ref, wgcn_ref, wqkv_ref, wo_ref, wff1_ref, wff2_ref,
                  wcvt_ref, vecs_ref, b1_ref, mw1_ref, mw2_ref, mw3_ref, mb_ref,
                  o_ref, flat_ref, *, bb, t, hidden, num_layers, mlp_h, nc_pad,
                  scale, use_convert):
    f32, bf16 = jnp.float32, jnp.bfloat16
    rows = bb * t

    def mm(x, w):          # 2-D channel-mixing matmul: bf16 operands, f32 accumulation
        return jax.lax.dot_general(x.astype(bf16), w.astype(bf16),
                                   (((1,), (0,)), ((), ())),
                                   preferred_element_type=f32)

    vecs = vecs_ref[...]                       # (14*L + 1, hidden) packed row-vector slab
    b1s = b1_ref[...]                          # (L, filter_size)

    def vec(i):                                # (1, hidden) f32 row
        return vecs[i:i + 1, :]

    # normalized adjacency, broadcast once and reused by every layer
    a_b = jnp.broadcast_to(a_ref[...].astype(bf16), (bb, t, t))

    out = x_ref[...].reshape(rows, hidden).astype(f32)   # token rows (channel-padded)
    out_l = out

    for l in range(num_layers):
        base = 14 * l

        # ---- GCN conv + ReLU: relu(A_hat @ X @ W + b), per-batch-element aggregation
        out3 = out.reshape(bb, t, hidden)
        ax = jax.lax.dot_general(a_b, out3.astype(bf16),
                                 (((2,), (1,)), ((0,), (0,))),
                                 preferred_element_type=f32).reshape(rows, hidden)
        gout = jnp.maximum(mm(ax, wgcn_ref[l]) + vec(base + 0), 0.0)

        # ---- single-head post-norm transformer layer (block attention per batch element)
        qkv = mm(gout, wqkv_ref[l])                               # (rows, 3H)
        q = (qkv[:, :hidden] + vec(base + 1)).reshape(bb, t, hidden)
        k = (qkv[:, hidden:2 * hidden] + vec(base + 2)).reshape(bb, t, hidden)
        v = (qkv[:, 2 * hidden:] + vec(base + 3)).reshape(bb, t, hidden)

        s = jax.lax.dot_general(q.astype(bf16), k.astype(bf16),
                                (((2,), (2,)), ((0,), (0,))),
                                preferred_element_type=f32) * scale   # (bb, t, t)
        s = s - jnp.max(s, axis=-1, keepdims=True)                    # exact f32 softmax
        p = jnp.exp(s)
        p = p / jnp.sum(p, axis=-1, keepdims=True)

        ctx = jax.lax.dot_general(p.astype(bf16), v.astype(bf16),
                                  (((2,), (1,)), ((0,), (0,))),
                                  preferred_element_type=f32).reshape(rows, hidden)
        attn = mm(ctx, wo_ref[l]) + vec(base + 4)
        h = _layernorm(gout + attn, vec(base + 6), vec(base + 7))
        ff = jnp.maximum(mm(h, wff1_ref[l]) + b1s[l:l + 1, :], 0.0)
        ff = mm(ff, wff2_ref[l]) + vec(base + 5)
        tout = _layernorm(h + ff, vec(base + 8), vec(base + 9))

        # ---- residual (torch: out + out_l; convert1 only on the first dim mismatch)
        if l == 0 and use_convert:
            out_l = tout + (mm(out_l, wcvt_ref[...]) + vec(14 * num_layers))
        else:
            out_l = tout + out_l

        # ---- BatchNorm1d (eval, running stats) + ReLU; Dropout(0.1) identity in eval
        inv = vec(base + 10) * jax.lax.rsqrt(vec(base + 13) + 1e-5)
        out = jnp.maximum((out_l - vec(base + 12)) * inv + vec(base + 11), 0.0)

    # ---- flatten(1,2) via lane-offset stores into VMEM scratch, then one big matmul
    #      per MLP layer (K = T*hidden) instead of T tiny K=hidden matmuls.
    out3 = out.reshape(bb, t, hidden)
    for tt in range(t):
        flat_ref[:, tt * hidden:(tt + 1) * hidden] = out3[:, tt, :]
    flat = flat_ref[...]                                          # (bb, T*hidden)

    mb = mb_ref[...]
    h1 = jnp.maximum(mm(flat, mw1_ref[...]) + mb[0:1, :mlp_h], 0.0)
    h2 = jnp.maximum(mm(h1, mw2_ref[...]) + mb[1:2, :mlp_h], 0.0)
    o_ref[...] = mm(h2, mw3_ref[...]) + mb[2:3, :nc_pad]


# --------------------------------------------------------------------------- full model
def a_tilde(A):
    # D^-0.5 A D^-0.5 with tol=1e-4, matching the torch A_tilde (A already has self-loops).
    deg = jnp.sum(A, axis=1)
    frac = jnp.diag((deg + 1e-4) ** (-0.5))
    return (frac @ (A @ frac)).astype(jnp.float32)


def spatiotemp_forward(features, A, params):
    B, T, in_dim = features.shape
    hidden = params["gcn"][0]["w"].shape[1]
    num_layers = len(params["gcn"])
    mlp_h = params["mlp"]["w1"].shape[1]
    num_classes = params["mlp"]["w3"].shape[1]
    nc_pad = ((num_classes + 127) // 128) * 128
    assert in_dim <= hidden, "channel-padding scheme assumes in_dim <= hidden"
    use_convert = in_dim != hidden

    # normalized adjacency, (T, T) only — no block-diagonal kron over the batch
    A_hat = a_tilde(A + jnp.eye(T, dtype=A.dtype))

    # channel-pad tokens (and the two in_dim-input weights) to `hidden`; zero pad keeps math exact
    x = jnp.pad(features.astype(jnp.float32), ((0, 0), (0, 0), (0, hidden - in_dim)))

    def pad_rows(w):
        return jnp.pad(w, ((0, hidden - w.shape[0]), (0, 0)))

    bf16 = jnp.bfloat16
    wgcn = jnp.stack([pad_rows(params["gcn"][0]["w"])]
                     + [params["gcn"][i]["w"] for i in range(1, num_layers)]).astype(bf16)
    wqkv = jnp.stack([params["trans"][i]["wqkv"] for i in range(num_layers)]).astype(bf16)
    wo = jnp.stack([params["trans"][i]["wo"] for i in range(num_layers)]).astype(bf16)
    wff1 = jnp.stack([params["trans"][i]["w1"] for i in range(num_layers)]).astype(bf16)
    wff2 = jnp.stack([params["trans"][i]["w2"] for i in range(num_layers)]).astype(bf16)
    wcvt = pad_rows(params["convert1"]["w"]).astype(bf16)

    # one packed (14L+1, hidden) f32 slab for all biases / LN / BN parameters
    rows = []
    for i in range(num_layers):
        g, tr, bn = params["gcn"][i], params["trans"][i], params["bn"][i]
        rows += [g["b"],
                 tr["bqkv"][:, :hidden], tr["bqkv"][:, hidden:2 * hidden],
                 tr["bqkv"][:, 2 * hidden:], tr["bo"], tr["b2"],
                 tr["ln1_g"], tr["ln1_b"], tr["ln2_g"], tr["ln2_b"],
                 bn["gamma"], bn["beta"], bn["mean"], bn["var"]]
    rows.append(params["convert1"]["b"])
    vecs = jnp.concatenate(rows, axis=0).astype(jnp.float32)
    b1s = jnp.concatenate([params["trans"][i]["b1"] for i in range(num_layers)],
                          axis=0).astype(jnp.float32)

    m = params["mlp"]
    mw1 = m["w1"].astype(bf16)                                          # (T*hidden, mlp_h)
    mw2 = m["w2"].astype(bf16)
    mw3 = jnp.pad(m["w3"], ((0, 0), (0, nc_pad - num_classes))).astype(bf16)
    bw = max(mlp_h, nc_pad)
    mb = jnp.concatenate([jnp.pad(m["b1"], ((0, 0), (0, bw - mlp_h))),
                          jnp.pad(m["b2"], ((0, 0), (0, bw - mlp_h))),
                          jnp.pad(m["b3"], ((0, 0), (0, bw - num_classes)))],
                         axis=0).astype(jnp.float32)                    # (3, bw)

    # batch tile: aim for >=~256 token rows per grid step; grid shards batch (2 TCs on v7x)
    bb = B
    if B % 8 == 0:
        cand = max(8, min(B, (max(1, 256 // T) // 8) * 8))
        while B % cand:
            cand -= 8
        bb = max(cand, 8)
    grid = (B // bb,)

    kernel = functools.partial(
        _fused_kernel, bb=bb, t=T, hidden=hidden, num_layers=num_layers,
        mlp_h=mlp_h, nc_pad=nc_pad, scale=1.0 / math.sqrt(hidden),
        use_convert=use_convert)

    operands = (A_hat, x, wgcn, wqkv, wo, wff1, wff2, wcvt, vecs, b1s, mw1, mw2, mw3, mb)

    def _full(a):      # whole-array, VMEM-resident across all grid steps
        return pl.BlockSpec(a.shape, lambda i: (0,) * a.ndim)

    in_specs = ([pl.BlockSpec((T, T), lambda i: (0, 0)),
                 pl.BlockSpec((bb, T, hidden), lambda i: (i, 0, 0))]
                + [_full(a) for a in operands[2:]])

    # re-derived VMEM budget: packed bf16 weights + activation tile + double-buffer headroom
    operand_bytes = sum(int(a.size) * a.dtype.itemsize for a in operands)
    act_bytes = bb * T * (8 * hidden + nc_pad) * 4
    vmem_budget = int(min(64 * 1024 * 1024,
                          max(16 * 1024 * 1024, 4 * operand_bytes + 16 * act_bytes)))

    logits_pad = pl.pallas_call(
        kernel,
        out_shape=jax.ShapeDtypeStruct((B, nc_pad), jnp.float32),
        grid=grid,
        in_specs=in_specs,
        out_specs=pl.BlockSpec((bb, nc_pad), lambda i: (i, 0)),
        scratch_shapes=[pltpu.VMEM((bb, T * hidden), jnp.float32)],
        compiler_params=pltpu.CompilerParams(
            dimension_semantics=("parallel",),
            vmem_limit_bytes=vmem_budget),
    )(*operands)
    return logits_pad[:, :num_classes]


# ------------------------------------------------------------------------ param init
def init_params(key, in_dim, hidden, filter_size, time_dim, num_classes, num_layers):
    def dense(k, fan_in, fan_out, scale=0.1):
        return (scale * jax.random.normal(k, (fan_in, fan_out), jnp.float32),
                jnp.zeros((1, fan_out), jnp.float32))

    keys = iter(jax.random.split(key, 64))
    params = {"gcn": [], "trans": [], "bn": []}

    for i in range(num_layers):
        cin = in_dim if i == 0 else hidden
        w, b = dense(next(keys), cin, hidden)
        params["gcn"].append({"w": w, "b": b})

        wqkv, bqkv = dense(next(keys), hidden, 3 * hidden)
        wo, bo = dense(next(keys), hidden, hidden)
        w1, b1 = dense(next(keys), hidden, filter_size)
        w2, b2 = dense(next(keys), filter_size, hidden)
        params["trans"].append({
            "wqkv": wqkv, "bqkv": bqkv, "wo": wo, "bo": bo,
            "w1": w1, "b1": b1, "w2": w2, "b2": b2,
            "ln1_g": jnp.ones((1, hidden), jnp.float32),
            "ln1_b": jnp.zeros((1, hidden), jnp.float32),
            "ln2_g": jnp.ones((1, hidden), jnp.float32),
            "ln2_b": jnp.zeros((1, hidden), jnp.float32)})

        params["bn"].append({"gamma": jnp.ones((1, hidden), jnp.float32),
                             "beta": jnp.zeros((1, hidden), jnp.float32),
                             "mean": jnp.zeros((1, hidden), jnp.float32),
                             "var": jnp.ones((1, hidden), jnp.float32)})

    wc, bc = dense(next(keys), in_dim, hidden)
    params["convert1"] = {"w": wc, "b": bc}

    w1, b1 = dense(next(keys), hidden * time_dim, 128)
    w2, b2 = dense(next(keys), 128, 128)
    w3, b3 = dense(next(keys), 128, num_classes)
    params["mlp"] = {"w1": w1, "b1": b1, "w2": w2, "b2": b2, "w3": w3, "b3": b3}
    return params


# --------------------------------------------------------------------------------- main
if __name__ == "__main__":
    B, T, IN_DIM, HIDDEN, NUM_CLASSES, NUM_LAYERS = 2, 8, 4, 32, 10, 2

    key = jax.random.PRNGKey(0)
    k_feat, k_adj, k_param = jax.random.split(key, 3)

    features = jax.random.normal(k_feat, (B, T, IN_DIM), jnp.float32)

    # symmetric 0/1 adjacency with zero diagonal (self-loops added in forward)
    a_rand = jax.random.uniform(k_adj, (T, T))
    A = ((a_rand + a_rand.T) > 1.0).astype(jnp.float32)
    A = A * (1.0 - jnp.eye(T, dtype=jnp.float32))

    params = init_params(k_param, IN_DIM, HIDDEN, HIDDEN, T, NUM_CLASSES, NUM_LAYERS)

    logits = jax.jit(spatiotemp_forward)(features, A, params)
    logits = jax.block_until_ready(logits)

    assert logits.shape == (B, NUM_CLASSES), logits.shape
    assert bool(jnp.all(jnp.isfinite(logits)))
    print("KERNEL_OK")
</pallas_src>

<mosaic_0001>
module attributes {stable_mosaic.version = 11 : i64} {
  func.func @_fused_kernel(%arg0: i32, %arg1: memref<8x8xf32, #tpu.memory_space<vmem>>, %arg2: memref<2x8x32xf32, #tpu.memory_space<vmem>>, %arg3: memref<2x32x32xbf16, #tpu.memory_space<vmem>>, %arg4: memref<2x32x96xbf16, #tpu.memory_space<vmem>>, %arg5: memref<2x32x32xbf16, #tpu.memory_space<vmem>>, %arg6: memref<2x32x32xbf16, #tpu.memory_space<vmem>>, %arg7: memref<2x32x32xbf16, #tpu.memory_space<vmem>>, %arg8: memref<32x32xbf16, #tpu.memory_space<vmem>>, %arg9: memref<29x32xf32, #tpu.memory_space<vmem>>, %arg10: memref<2x32xf32, #tpu.memory_space<vmem>>, %arg11: memref<256x128xbf16, #tpu.memory_space<vmem>>, %arg12: memref<128x128xbf16, #tpu.memory_space<vmem>>, %arg13: memref<128x128xbf16, #tpu.memory_space<vmem>>, %arg14: memref<3x128xf32, #tpu.memory_space<vmem>>, %arg15: memref<2x128xf32, #tpu.memory_space<vmem>>, %arg16: memref<2x256xf32, #tpu.memory_space<vmem>>) attributes {dimension_semantics = [#tpu.dimension_semantics<parallel>], iteration_bounds = array<i64: 1>, scalar_prefetch = 0 : i64, scratch_operands = 1 : i64, tpu.core_type = #tpu.core_type<tc>, window_params = [{pipeline_mode = #tpu.pipeline_mode<synchronous>, transform_indices = @transform_0, window_bounds = array<i64: 8, 8>}, {transform_indices = @transform_1, window_bounds = array<i64: 2, 8, 32>}, {pipeline_mode = #tpu.pipeline_mode<synchronous>, transform_indices = @transform_2, window_bounds = array<i64: 2, 32, 32>}, {pipeline_mode = #tpu.pipeline_mode<synchronous>, transform_indices = @transform_3, window_bounds = array<i64: 2, 32, 96>}, {pipeline_mode = #tpu.pipeline_mode<synchronous>, transform_indices = @transform_4, window_bounds = array<i64: 2, 32, 32>}, {pipeline_mode = #tpu.pipeline_mode<synchronous>, transform_indices = @transform_5, window_bounds = array<i64: 2, 32, 32>}, {pipeline_mode = #tpu.pipeline_mode<synchronous>, transform_indices = @transform_6, window_bounds = array<i64: 2, 32, 32>}, {pipeline_mode = #tpu.pipeline_mode<synchronous>, transform_indices = @transform_7, window_bounds = array<i64: 32, 32>}, {pipeline_mode = #tpu.pipeline_mode<synchronous>, transform_indices = @transform_8, window_bounds = array<i64: 29, 32>}, {pipeline_mode = #tpu.pipeline_mode<synchronous>, transform_indices = @transform_9, window_bounds = array<i64: 2, 32>}, {pipeline_mode = #tpu.pipeline_mode<synchronous>, transform_indices = @transform_10, window_bounds = array<i64: 256, 128>}, {pipeline_mode = #tpu.pipeline_mode<synchronous>, transform_indices = @transform_11, window_bounds = array<i64: 128, 128>}, {pipeline_mode = #tpu.pipeline_mode<synchronous>, transform_indices = @transform_12, window_bounds = array<i64: 128, 128>}, {pipeline_mode = #tpu.pipeline_mode<synchronous>, transform_indices = @transform_13, window_bounds = array<i64: 3, 128>}, {transform_indices = @transform_14, window_bounds = array<i64: 2, 128>}]} {
    %c0 = arith.constant 0 : index
    %c0_0 = arith.constant 0 : index
    %0 = vector.load %arg9[%c0, %c0_0] : memref<29x32xf32, #tpu.memory_space<vmem>>, vector<29x32xf32>
    %c0_1 = arith.constant 0 : index
    %c0_2 = arith.constant 0 : index
    %1 = vector.load %arg10[%c0_1, %c0_2] : memref<2x32xf32, #tpu.memory_space<vmem>>, vector<2x32xf32>
    %c0_3 = arith.constant 0 : index
    %c0_4 = arith.constant 0 : index
    %2 = vector.load %arg1[%c0_3, %c0_4] : memref<8x8xf32, #tpu.memory_space<vmem>>, vector<8x8xf32>
    %3 = arith.truncf %2 : vector<8x8xf32> to vector<8x8xbf16>
    %4 = vector.shape_cast %3 : vector<8x8xbf16> to vector<1x8x8xbf16>
    %5 = vector.broadcast %4 : vector<1x8x8xbf16> to vector<2x8x8xbf16>
    %c0_5 = arith.constant 0 : index
    %c0_6 = arith.constant 0 : index
    %c0_7 = arith.constant 0 : index
    %6 = vector.load %arg2[%c0_5, %c0_6, %c0_7] : memref<2x8x32xf32, #tpu.memory_space<vmem>>, vector<2x8x32xf32>
    %7 = vector.shape_cast %6 : vector<2x8x32xf32> to vector<16x32xf32>
    %8 = vector.shape_cast %7 : vector<16x32xf32> to vector<2x8x32xf32>
    %9 = arith.truncf %8 : vector<2x8x32xf32> to vector<2x8x32xbf16>
    %cst = arith.constant dense<0.000000e+00> : vector<2x8x32xf32>
    %10 = tpu.matmul %5, %9, %cst {dimension_numbers = #tpu.dot_dimension_numbers<[2], [1], [1], [2], [0, 0, 0, 1, 1, 2], [0], [0]>} : vector<2x8x8xbf16>, vector<2x8x32xbf16>, vector<2x8x32xf32> -> vector<2x8x32xf32>
    %11 = vector.shape_cast %10 : vector<2x8x32xf32> to vector<16x32xf32>
    %c0_8 = arith.constant 0 : index
    %c0_9 = arith.constant 0 : index
    %c0_10 = arith.constant 0 : index
    %12 = vector.load %arg3[%c0_8, %c0_9, %c0_10] : memref<2x32x32xbf16, #tpu.memory_space<vmem>>, vector<1x32x32xbf16>
    %13 = vector.shape_cast %12 : vector<1x32x32xbf16> to vector<32x32xbf16>
    %14 = arith.truncf %11 : vector<16x32xf32> to vector<16x32xbf16>
    %cst_11 = arith.constant dense<0.000000e+00> : vector<16x32xf32>
    %15 = tpu.matmul %14, %13, %cst_11 {dimension_numbers = #tpu.dot_dimension_numbers<[1], [0], [0], [1], [0, 0, 1, 1], [], []>} : vector<16x32xbf16>, vector<32x32xbf16>, vector<16x32xf32> -> vector<16x32xf32>
    %16 = vector.extract_strided_slice %0 {offsets = [0, 0], sizes = [1, 32], strides = [1, 1]} : vector<29x32xf32> to vector<1x32xf32>
    %17 = vector.broadcast %16 : vector<1x32xf32> to vector<16x32xf32>
    %18 = arith.addf %15, %17 : vector<16x32xf32>
    %cst_12 = arith.constant 0.000000e+00 : f32
    %19 = vector.broadcast %cst_12 : f32 to vector<16x32xf32>
    %20 = arith.maximumf %18, %19 : vector<16x32xf32>
    %c0_13 = arith.constant 0 : index
    %c0_14 = arith.constant 0 : index
    %c0_15 = arith.constant 0 : index
    %21 = vector.load %arg4[%c0_13, %c0_14, %c0_15] : memref<2x32x96xbf16, #tpu.memory_space<vmem>>, vector<1x32x96xbf16>
    %22 = vector.shape_cast %21 : vector<1x32x96xbf16> to vector<32x96xbf16>
    %23 = arith.truncf %20 : vector<16x32xf32> to vector<16x32xbf16>
    %cst_16 = arith.constant dense<0.000000e+00> : vector<16x96xf32>
    %24 = tpu.matmul %23, %22, %cst_16 {dimension_numbers = #tpu.dot_dimension_numbers<[1], [0], [0], [1], [0, 0, 1, 1], [], []>} : vector<16x32xbf16>, vector<32x96xbf16>, vector<16x96xf32> -> vector<16x96xf32>
    %25 = vector.extract_strided_slice %24 {offsets = [0, 0], sizes = [16, 32], strides = [1, 1]} : vector<16x96xf32> to vector<16x32xf32>
    %26 = vector.extract_strided_slice %0 {offsets = [1, 0], sizes = [1, 32], strides = [1, 1]} : vector<29x32xf32> to vector<1x32xf32>
    %27 = vector.broadcast %26 : vector<1x32xf32> to vector<16x32xf32>
    %28 = arith.addf %25, %27 : vector<16x32xf32>
    %29 = vector.shape_cast %28 : vector<16x32xf32> to vector<2x8x32xf32>
    %30 = vector.extract_strided_slice %24 {offsets = [0, 32], sizes = [16, 32], strides = [1, 1]} : vector<16x96xf32> to vector<16x32xf32>
    %31 = vector.extract_strided_slice %0 {offsets = [2, 0], sizes = [1, 32], strides = [1, 1]} : vector<29x32xf32> to vector<1x32xf32>
    %32 = vector.broadcast %31 : vector<1x32xf32> to vector<16x32xf32>
    %33 = arith.addf %30, %32 : vector<16x32xf32>
    %34 = vector.shape_cast %33 : vector<16x32xf32> to vector<2x8x32xf32>
    %35 = vector.extract_strided_slice %24 {offsets = [0, 64], sizes = [16, 32], strides = [1, 1]} : vector<16x96xf32> to vector<16x32xf32>
    %36 = vector.extract_strided_slice %0 {offsets = [3, 0], sizes = [1, 32], strides = [1, 1]} : vector<29x32xf32> to vector<1x32xf32>
    %37 = vector.broadcast %36 : vector<1x32xf32> to vector<16x32xf32>
    %38 = arith.addf %35, %37 : vector<16x32xf32>
    %39 = vector.shape_cast %38 : vector<16x32xf32> to vector<2x8x32xf32>
    %40 = arith.truncf %29 : vector<2x8x32xf32> to vector<2x8x32xbf16>
    %41 = arith.truncf %34 : vector<2x8x32xf32> to vector<2x8x32xbf16>
    %cst_17 = arith.constant dense<0.000000e+00> : vector<2x8x8xf32>
    %42 = tpu.matmul %40, %41, %cst_17 {dimension_numbers = #tpu.dot_dimension_numbers<[2], [2], [1], [1], [0, 0, 0, 1, 1, 1], [0], [0]>} : vector<2x8x32xbf16>, vector<2x8x32xbf16>, vector<2x8x8xf32> -> vector<2x8x8xf32>
    %cst_18 = arith.constant 0.176776692 : f32
    %43 = vector.broadcast %cst_18 : f32 to vector<2x8x8xf32>
    %44 = arith.mulf %42, %43 : vector<2x8x8xf32>
    %cst_19 = arith.constant dense<0xFF800000> : vector<2x8xf32>
    %45 = vector.multi_reduction <maximumf>, %44, %cst_19 [2] : vector<2x8x8xf32> to vector<2x8xf32>
    %46 = vector.shape_cast %45 : vector<2x8xf32> to vector<2x8x1xf32>
    %47 = vector.broadcast %46 : vector<2x8x1xf32> to vector<2x8x8xf32>
    %48 = arith.subf %44, %47 : vector<2x8x8xf32>
    %49 = math.exp %48 : vector<2x8x8xf32>
    %cst_20 = arith.constant dense<0.000000e+00> : vector<2x8xf32>
    %50 = vector.multi_reduction <add>, %49, %cst_20 [2] : vector<2x8x8xf32> to vector<2x8xf32>
    %51 = vector.shape_cast %50 : vector<2x8xf32> to vector<2x8x1xf32>
    %52 = vector.broadcast %51 : vector<2x8x1xf32> to vector<2x8x8xf32>
    %53 = arith.divf %49, %52 : vector<2x8x8xf32>
    %54 = arith.truncf %53 : vector<2x8x8xf32> to vector<2x8x8xbf16>
    %55 = arith.truncf %39 : vector<2x8x32xf32> to vector<2x8x32xbf16>
    %cst_21 = arith.constant dense<0.000000e+00> : vector<2x8x32xf32>
    %56 = tpu.matmul %54, %55, %cst_21 {dimension_numbers = #tpu.dot_dimension_numbers<[2], [1], [1], [2], [0, 0, 0, 1, 1, 2], [0], [0]>} : vector<2x8x8xbf16>, vector<2x8x32xbf16>, vector<2x8x32xf32> -> vector<2x8x32xf32>
    %57 = vector.shape_cast %56 : vector<2x8x32xf32> to vector<16x32xf32>
    %c0_22 = arith.constant 0 : index
    %c0_23 = arith.constant 0 : index
    %c0_24 = arith.constant 0 : index
    %58 = vector.load %arg5[%c0_22, %c0_23, %c0_24] : memref<2x32x32xbf16, #tpu.memory_space<vmem>>, vector<1x32x32xbf16>
    %59 = vector.shape_cast %58 : vector<1x32x32xbf16> to vector<32x32xbf16>
    %60 = arith.truncf %57 : vector<16x32xf32> to vector<16x32xbf16>
    %cst_25 = arith.constant dense<0.000000e+00> : vector<16x32xf32>
    %61 = tpu.matmul %60, %59, %cst_25 {dimension_numbers = #tpu.dot_dimension_numbers<[1], [0], [0], [1], [0, 0, 1, 1], [], []>} : vector<16x32xbf16>, vector<32x32xbf16>, vector<16x32xf32> -> vector<16x32xf32>
    %62 = vector.extract_strided_slice %0 {offsets = [4, 0], sizes = [1, 32], strides = [1, 1]} : vector<29x32xf32> to vector<1x32xf32>
    %63 = vector.broadcast %62 : vector<1x32xf32> to vector<16x32xf32>
    %64 = arith.addf %61, %63 : vector<16x32xf32>
    %65 = arith.addf %20, %64 : vector<16x32xf32>
    %66 = vector.extract_strided_slice %0 {offsets = [6, 0], sizes = [1, 32], strides = [1, 1]} : vector<29x32xf32> to vector<1x32xf32>
    %67 = vector.extract_strided_slice %0 {offsets = [7, 0], sizes = [1, 32], strides = [1, 1]} : vector<29x32xf32> to vector<1x32xf32>
    %cst_26 = arith.constant dense<0.000000e+00> : vector<16xf32>
    %68 = vector.multi_reduction <add>, %65, %cst_26 [1] : vector<16x32xf32> to vector<16xf32>
    %69 = vector.shape_cast %68 : vector<16xf32> to vector<16x1xf32>
    %cst_27 = arith.constant 3.200000e+01 : f32
    %70 = vector.broadcast %cst_27 : f32 to vector<16x1xf32>
    %71 = arith.divf %69, %70 : vector<16x1xf32>
    %72 = vector.broadcast %71 : vector<16x1xf32> to vector<16x32xf32>
    %73 = arith.subf %65, %72 : vector<16x32xf32>
    %74 = arith.mulf %73, %73 : vector<16x32xf32>
    %cst_28 = arith.constant dense<0.000000e+00> : vector<16xf32>
    %75 = vector.multi_reduction <add>, %74, %cst_28 [1] : vector<16x32xf32> to vector<16xf32>
    %76 = vector.shape_cast %75 : vector<16xf32> to vector<16x1xf32>
    %cst_29 = arith.constant 3.200000e+01 : f32
    %77 = vector.broadcast %cst_29 : f32 to vector<16x1xf32>
    %78 = arith.divf %76, %77 : vector<16x1xf32>
    %79 = vector.broadcast %71 : vector<16x1xf32> to vector<16x32xf32>
    %80 = arith.subf %65, %79 : vector<16x32xf32>
    %cst_30 = arith.constant 9.99999974E-6 : f32
    %81 = vector.broadcast %cst_30 : f32 to vector<16x1xf32>
    %82 = arith.addf %78, %81 : vector<16x1xf32>
    %83 = math.rsqrt %82 : vector<16x1xf32>
    %84 = vector.broadcast %83 : vector<16x1xf32> to vector<16x32xf32>
    %85 = arith.mulf %80, %84 : vector<16x32xf32>
    %86 = vector.broadcast %66 : vector<1x32xf32> to vector<16x32xf32>
    %87 = arith.mulf %85, %86 : vector<16x32xf32>
    %88 = vector.broadcast %67 : vector<1x32xf32> to vector<16x32xf32>
    %89 = arith.addf %87, %88 : vector<16x32xf32>
    %c0_31 = arith.constant 0 : index
    %c0_32 = arith.constant 0 : index
    %c0_33 = arith.constant 0 : index
    %90 = vector.load %arg6[%c0_31, %c0_32, %c0_33] : memref<2x32x32xbf16, #tpu.memory_space<vmem>>, vector<1x32x32xbf16>
    %91 = vector.shape_cast %90 : vector<1x32x32xbf16> to vector<32x32xbf16>
    %92 = arith.truncf %89 : vector<16x32xf32> to vector<16x32xbf16>
    %cst_34 = arith.constant dense<0.000000e+00> : vector<16x32xf32>
    %93 = tpu.matmul %92, %91, %cst_34 {dimension_numbers = #tpu.dot_dimension_numbers<[1], [0], [0], [1], [0, 0, 1, 1], [], []>} : vector<16x32xbf16>, vector<32x32xbf16>, vector<16x32xf32> -> vector<16x32xf32>
    %94 = vector.extract_strided_slice %1 {offsets = [0, 0], sizes = [1, 32], strides = [1, 1]} : vector<2x32xf32> to vector<1x32xf32>
    %95 = vector.broadcast %94 : vector<1x32xf32> to vector<16x32xf32>
    %96 = arith.addf %93, %95 : vector<16x32xf32>
    %cst_35 = arith.constant 0.000000e+00 : f32
    %97 = vector.broadcast %cst_35 : f32 to vector<16x32xf32>
    %98 = arith.maximumf %96, %97 : vector<16x32xf32>
    %c0_36 = arith.constant 0 : index
    %c0_37 = arith.constant 0 : index
    %c0_38 = arith.constant 0 : index
    %99 = vector.load %arg7[%c0_36, %c0_37, %c0_38] : memref<2x32x32xbf16, #tpu.memory_space<vmem>>, vector<1x32x32xbf16>
    %100 = vector.shape_cast %99 : vector<1x32x32xbf16> to vector<32x32xbf16>
    %101 = arith.truncf %98 : vector<16x32xf32> to vector<16x32xbf16>
    %cst_39 = arith.constant dense<0.000000e+00> : vector<16x32xf32>
    %102 = tpu.matmul %101, %100, %cst_39 {dimension_numbers = #tpu.dot_dimension_numbers<[1], [0], [0], [1], [0, 0, 1, 1], [], []>} : vector<16x32xbf16>, vector<32x32xbf16>, vector<16x32xf32> -> vector<16x32xf32>
    %103 = vector.extract_strided_slice %0 {offsets = [5, 0], sizes = [1, 32], strides = [1, 1]} : vector<29x32xf32> to vector<1x32xf32>
    %104 = vector.broadcast %103 : vector<1x32xf32> to vector<16x32xf32>
    %105 = arith.addf %102, %104 : vector<16x32xf32>
    %106 = arith.addf %89, %105 : vector<16x32xf32>
    %107 = vector.extract_strided_slice %0 {offsets = [8, 0], sizes = [1, 32], strides = [1, 1]} : vector<29x32xf32> to vector<1x32xf32>
    %108 = vector.extract_strided_slice %0 {offsets = [9, 0], sizes = [1, 32], strides = [1, 1]} : vector<29x32xf32> to vector<1x32xf32>
    %cst_40 = arith.constant dense<0.000000e+00> : vector<16xf32>
    %109 = vector.multi_reduction <add>, %106, %cst_40 [1] : vector<16x32xf32> to vector<16xf32>
    %110 = vector.shape_cast %109 : vector<16xf32> to vector<16x1xf32>
    %cst_41 = arith.constant 3.200000e+01 : f32
    %111 = vector.broadcast %cst_41 : f32 to vector<16x1xf32>
    %112 = arith.divf %110, %111 : vector<16x1xf32>
    %113 = vector.broadcast %112 : vector<16x1xf32> to vector<16x32xf32>
    %114 = arith.subf %106, %113 : vector<16x32xf32>
    %115 = arith.mulf %114, %114 : vector<16x32xf32>
    %cst_42 = arith.constant dense<0.000000e+00> : vector<16xf32>
    %116 = vector.multi_reduction <add>, %115, %cst_42 [1] : vector<16x32xf32> to vector<16xf32>
    %117 = vector.shape_cast %116 : vector<16xf32> to vector<16x1xf32>
    %cst_43 = arith.constant 3.200000e+01 : f32
    %118 = vector.broadcast %cst_43 : f32 to vector<16x1xf32>
    %119 = arith.divf %117, %118 : vector<16x1xf32>
    %120 = vector.broadcast %112 : vector<16x1xf32> to vector<16x32xf32>
    %121 = arith.subf %106, %120 : vector<16x32xf32>
    %cst_44 = arith.constant 9.99999974E-6 : f32
    %122 = vector.broadcast %cst_44 : f32 to vector<16x1xf32>
    %123 = arith.addf %119, %122 : vector<16x1xf32>
    %124 = math.rsqrt %123 : vector<16x1xf32>
    %125 = vector.broadcast %124 : vector<16x1xf32> to vector<16x32xf32>
    %126 = arith.mulf %121, %125 : vector<16x32xf32>
    %127 = vector.broadcast %107 : vector<1x32xf32> to vector<16x32xf32>
    %128 = arith.mulf %126, %127 : vector<16x32xf32>
    %129 = vector.broadcast %108 : vector<1x32xf32> to vector<16x32xf32>
    %130 = arith.addf %128, %129 : vector<16x32xf32>
    %c0_45 = arith.constant 0 : index
    %c0_46 = arith.constant 0 : index
    %131 = vector.load %arg8[%c0_45, %c0_46] : memref<32x32xbf16, #tpu.memory_space<vmem>>, vector<32x32xbf16>
    %132 = arith.truncf %7 : vector<16x32xf32> to vector<16x32xbf16>
    %cst_47 = arith.constant dense<0.000000e+00> : vector<16x32xf32>
    %133 = tpu.matmul %132, %131, %cst_47 {dimension_numbers = #tpu.dot_dimension_numbers<[1], [0], [0], [1], [0, 0, 1, 1], [], []>} : vector<16x32xbf16>, vector<32x32xbf16>, vector<16x32xf32> -> vector<16x32xf32>
    %134 = vector.extract_strided_slice %0 {offsets = [28, 0], sizes = [1, 32], strides = [1, 1]} : vector<29x32xf32> to vector<1x32xf32>
    %135 = vector.broadcast %134 : vector<1x32xf32> to vector<16x32xf32>
    %136 = arith.addf %133, %135 : vector<16x32xf32>
    %137 = arith.addf %130, %136 : vector<16x32xf32>
    %138 = vector.extract_strided_slice %0 {offsets = [10, 0], sizes = [1, 32], strides = [1, 1]} : vector<29x32xf32> to vector<1x32xf32>
    %139 = vector.extract_strided_slice %0 {offsets = [13, 0], sizes = [1, 32], strides = [1, 1]} : vector<29x32xf32> to vector<1x32xf32>
    %cst_48 = arith.constant 9.99999974E-6 : f32
    %140 = vector.broadcast %cst_48 : f32 to vector<1x32xf32>
    %141 = arith.addf %139, %140 : vector<1x32xf32>
    %142 = math.rsqrt %141 : vector<1x32xf32>
    %143 = arith.mulf %138, %142 : vector<1x32xf32>
    %144 = vector.extract_strided_slice %0 {offsets = [12, 0], sizes = [1, 32], strides = [1, 1]} : vector<29x32xf32> to vector<1x32xf32>
    %145 = vector.broadcast %144 : vector<1x32xf32> to vector<16x32xf32>
    %146 = arith.subf %137, %145 : vector<16x32xf32>
    %147 = vector.broadcast %143 : vector<1x32xf32> to vector<16x32xf32>
    %148 = arith.mulf %146, %147 : vector<16x32xf32>
    %149 = vector.extract_strided_slice %0 {offsets = [11, 0], sizes = [1, 32], strides = [1, 1]} : vector<29x32xf32> to vector<1x32xf32>
    %150 = vector.broadcast %149 : vector<1x32xf32> to vector<16x32xf32>
    %151 = arith.addf %148, %150 : vector<16x32xf32>
    %cst_49 = arith.constant 0.000000e+00 : f32
    %152 = vector.broadcast %cst_49 : f32 to vector<16x32xf32>
    %153 = arith.maximumf %151, %152 : vector<16x32xf32>
    %154 = vector.shape_cast %153 : vector<16x32xf32> to vector<2x8x32xf32>
    %155 = arith.truncf %154 : vector<2x8x32xf32> to vector<2x8x32xbf16>
    %cst_50 = arith.constant dense<0.000000e+00> : vector<2x8x32xf32>
    %156 = tpu.matmul %5, %155, %cst_50 {dimension_numbers = #tpu.dot_dimension_numbers<[2], [1], [1], [2], [0, 0, 0, 1, 1, 2], [0], [0]>} : vector<2x8x8xbf16>, vector<2x8x32xbf16>, vector<2x8x32xf32> -> vector<2x8x32xf32>
    %157 = vector.shape_cast %156 : vector<2x8x32xf32> to vector<16x32xf32>
    %c1 = arith.constant 1 : index
    %c0_51 = arith.constant 0 : index
    %c0_52 = arith.constant 0 : index
    %158 = vector.load %arg3[%c1, %c0_51, %c0_52] : memref<2x32x32xbf16, #tpu.memory_space<vmem>>, vector<1x32x32xbf16>
    %159 = vector.shape_cast %158 : vector<1x32x32xbf16> to vector<32x32xbf16>
    %160 = arith.truncf %157 : vector<16x32xf32> to vector<16x32xbf16>
    %cst_53 = arith.constant dense<0.000000e+00> : vector<16x32xf32>
    %161 = tpu.matmul %160, %159, %cst_53 {dimension_numbers = #tpu.dot_dimension_numbers<[1], [0], [0], [1], [0, 0, 1, 1], [], []>} : vector<16x32xbf16>, vector<32x32xbf16>, vector<16x32xf32> -> vector<16x32xf32>
    %162 = vector.extract_strided_slice %0 {offsets = [14, 0], sizes = [1, 32], strides = [1, 1]} : vector<29x32xf32> to vector<1x32xf32>
    %163 = vector.broadcast %162 : vector<1x32xf32> to vector<16x32xf32>
    %164 = arith.addf %161, %163 : vector<16x32xf32>
    %cst_54 = arith.constant 0.000000e+00 : f32
    %165 = vector.broadcast %cst_54 : f32 to vector<16x32xf32>
    %166 = arith.maximumf %164, %165 : vector<16x32xf32>
    %c1_55 = arith.constant 1 : index
    %c0_56 = arith.constant 0 : index
    %c0_57 = arith.constant 0 : index
    %167 = vector.load %arg4[%c1_55, %c0_56, %c0_57] : memref<2x32x96xbf16, #tpu.memory_space<vmem>>, vector<1x32x96xbf16>
    %168 = vector.shape_cast %167 : vector<1x32x96xbf16> to vector<32x96xbf16>
    %169 = arith.truncf %166 : vector<16x32xf32> to vector<16x32xbf16>
    %cst_58 = arith.constant dense<0.000000e+00> : vector<16x96xf32>
    %170 = tpu.matmul %169, %168, %cst_58 {dimension_numbers = #tpu.dot_dimension_numbers<[1], [0], [0], [1], [0, 0, 1, 1], [], []>} : vector<16x32xbf16>, vector<32x96xbf16>, vector<16x96xf32> -> vector<16x96xf32>
    %171 = vector.extract_strided_slice %170 {offsets = [0, 0], sizes = [16, 32], strides = [1, 1]} : vector<16x96xf32> to vector<16x32xf32>
    %172 = vector.extract_strided_slice %0 {offsets = [15, 0], sizes = [1, 32], strides = [1, 1]} : vector<29x32xf32> to vector<1x32xf32>
    %173 = vector.broadcast %172 : vector<1x32xf32> to vector<16x32xf32>
    %174 = arith.addf %171, %173 : vector<16x32xf32>
    %175 = vector.shape_cast %174 : vector<16x32xf32> to vector<2x8x32xf32>
    %176 = vector.extract_strided_slice %170 {offsets = [0, 32], sizes = [16, 32], strides = [1, 1]} : vector<16x96xf32> to vector<16x32xf32>
    %177 = vector.extract_strided_slice %0 {offsets = [16, 0], sizes = [1, 32], strides = [1, 1]} : vector<29x32xf32> to vector<1x32xf32>
    %178 = vector.broadcast %177 : vector<1x32xf32> to vector<16x32xf32>
    %179 = arith.addf %176, %178 : vector<16x32xf32>
    %180 = vector.shape_cast %179 : vector<16x32xf32> to vector<2x8x32xf32>
    %181 = vector.extract_strided_slice %170 {offsets = [0, 64], sizes = [16, 32], strides = [1, 1]} : vector<16x96xf32> to vector<16x32xf32>
    %182 = vector.extract_strided_slice %0 {offsets = [17, 0], sizes = [1, 32], strides = [1, 1]} : vector<29x32xf32> to vector<1x32xf32>
    %183 = vector.broadcast %182 : vector<1x32xf32> to vector<16x32xf32>
    %184 = arith.addf %181, %183 : vector<16x32xf32>
    %185 = vector.shape_cast %184 : vector<16x32xf32> to vector<2x8x32xf32>
    %186 = arith.truncf %175 : vector<2x8x32xf32> to vector<2x8x32xbf16>
    %187 = arith.truncf %180 : vector<2x8x32xf32> to vector<2x8x32xbf16>
    %cst_59 = arith.constant dense<0.000000e+00> : vector<2x8x8xf32>
    %188 = tpu.matmul %186, %187, %cst_59 {dimension_numbers = #tpu.dot_dimension_numbers<[2], [2], [1], [1], [0, 0, 0, 1, 1, 1], [0], [0]>} : vector<2x8x32xbf16>, vector<2x8x32xbf16>, vector<2x8x8xf32> -> vector<2x8x8xf32>
    %cst_60 = arith.constant 0.176776692 : f32
    %189 = vector.broadcast %cst_60 : f32 to vector<2x8x8xf32>
    %190 = arith.mulf %188, %189 : vector<2x8x8xf32>
    %cst_61 = arith.constant dense<0xFF800000> : vector<2x8xf32>
    %191 = vector.multi_reduction <maximumf>, %190, %cst_61 [2] : vector<2x8x8xf32> to vector<2x8xf32>
    %192 = vector.shape_cast %191 : vector<2x8xf32> to vector<2x8x1xf32>
    %193 = vector.broadcast %192 : vector<2x8x1xf32> to vector<2x8x8xf32>
    %194 = arith.subf %190, %193 : vector<2x8x8xf32>
    %195 = math.exp %194 : vector<2x8x8xf32>
    %cst_62 = arith.constant dense<0.000000e+00> : vector<2x8xf32>
    %196 = vector.multi_reduction <add>, %195, %cst_62 [2] : vector<2x8x8xf32> to vector<2x8xf32>
    %197 = vector.shape_cast %196 : vector<2x8xf32> to vector<2x8x1xf32>
    %198 = vector.broadcast %197 : vector<2x8x1xf32> to vector<2x8x8xf32>
    %199 = arith.divf %195, %198 : vector<2x8x8xf32>
    %200 = arith.truncf %199 : vector<2x8x8xf32> to vector<2x8x8xbf16>
    %201 = arith.truncf %185 : vector<2x8x32xf32> to vector<2x8x32xbf16>
    %cst_63 = arith.constant dense<0.000000e+00> : vector<2x8x32xf32>
    %202 = tpu.matmul %200, %201, %cst_63 {dimension_numbers = #tpu.dot_dimension_numbers<[2], [1], [1], [2], [0, 0, 0, 1, 1, 2], [0], [0]>} : vector<2x8x8xbf16>, vector<2x8x32xbf16>, vector<2x8x32xf32> -> vector<2x8x32xf32>
    %203 = vector.shape_cast %202 : vector<2x8x32xf32> to vector<16x32xf32>
    %c1_64 = arith.constant 1 : index
    %c0_65 = arith.constant 0 : index
    %c0_66 = arith.constant 0 : index
    %204 = vector.load %arg5[%c1_64, %c0_65, %c0_66] : memref<2x32x32xbf16, #tpu.memory_space<vmem>>, vector<1x32x32xbf16>
    %205 = vector.shape_cast %204 : vector<1x32x32xbf16> to vector<32x32xbf16>
    %206 = arith.truncf %203 : vector<16x32xf32> to vector<16x32xbf16>
    %cst_67 = arith.constant dense<0.000000e+00> : vector<16x32xf32>
    %207 = tpu.matmul %206, %205, %cst_67 {dimension_numbers = #tpu.dot_dimension_numbers<[1], [0], [0], [1], [0, 0, 1, 1], [], []>} : vector<16x32xbf16>, vector<32x32xbf16>, vector<16x32xf32> -> vector<16x32xf32>
    %208 = vector.extract_strided_slice %0 {offsets = [18, 0], sizes = [1, 32], strides = [1, 1]} : vector<29x32xf32> to vector<1x32xf32>
    %209 = vector.broadcast %208 : vector<1x32xf32> to vector<16x32xf32>
    %210 = arith.addf %207, %209 : vector<16x32xf32>
    %211 = arith.addf %166, %210 : vector<16x32xf32>
    %212 = vector.extract_strided_slice %0 {offsets = [20, 0], sizes = [1, 32], strides = [1, 1]} : vector<29x32xf32> to vector<1x32xf32>
    %213 = vector.extract_strided_slice %0 {offsets = [21, 0], sizes = [1, 32], strides = [1, 1]} : vector<29x32xf32> to vector<1x32xf32>
    %cst_68 = arith.constant dense<0.000000e+00> : vector<16xf32>
    %214 = vector.multi_reduction <add>, %211, %cst_68 [1] : vector<16x32xf32> to vector<16xf32>
    %215 = vector.shape_cast %214 : vector<16xf32> to vector<16x1xf32>
    %cst_69 = arith.constant 3.200000e+01 : f32
    %216 = vector.broadcast %cst_69 : f32 to vector<16x1xf32>
    %217 = arith.divf %215, %216 : vector<16x1xf32>
    %218 = vector.broadcast %217 : vector<16x1xf32> to vector<16x32xf32>
    %219 = arith.subf %211, %218 : vector<16x32xf32>
    %220 = arith.mulf %219, %219 : vector<16x32xf32>
    %cst_70 = arith.constant dense<0.000000e+00> : vector<16xf32>
    %221 = vector.multi_reduction <add>, %220, %cst_70 [1] : vector<16x32xf32> to vector<16xf32>
    %222 = vector.shape_cast %221 : vector<16xf32> to vector<16x1xf32>
    %cst_71 = arith.constant 3.200000e+01 : f32
    %223 = vector.broadcast %cst_71 : f32 to vector<16x1xf32>
    %224 = arith.divf %222, %223 : vector<16x1xf32>
    %225 = vector.broadcast %217 : vector<16x1xf32> to vector<16x32xf32>
    %226 = arith.subf %211, %225 : vector<16x32xf32>
    %cst_72 = arith.constant 9.99999974E-6 : f32
    %227 = vector.broadcast %cst_72 : f32 to vector<16x1xf32>
    %228 = arith.addf %224, %227 : vector<16x1xf32>
    %229 = math.rsqrt %228 : vector<16x1xf32>
    %230 = vector.broadcast %229 : vector<16x1xf32> to vector<16x32xf32>
    %231 = arith.mulf %226, %230 : vector<16x32xf32>
    %232 = vector.broadcast %212 : vector<1x32xf32> to vector<16x32xf32>
    %233 = arith.mulf %231, %232 : vector<16x32xf32>
    %234 = vector.broadcast %213 : vector<1x32xf32> to vector<16x32xf32>
    %235 = arith.addf %233, %234 : vector<16x32xf32>
    %c1_73 = arith.constant 1 : index
    %c0_74 = arith.constant 0 : index
    %c0_75 = arith.constant 0 : index
    %236 = vector.load %arg6[%c1_73, %c0_74, %c0_75] : memref<2x32x32xbf16, #tpu.memory_space<vmem>>, vector<1x32x32xbf16>
    %237 = vector.shape_cast %236 : vector<1x32x32xbf16> to vector<32x32xbf16>
    %238 = arith.truncf %235 : vector<16x32xf32> to vector<16x32xbf16>
    %cst_76 = arith.constant dense<0.000000e+00> : vector<16x32xf32>
    %239 = tpu.matmul %238, %237, %cst_76 {dimension_numbers = #tpu.dot_dimension_numbers<[1], [0], [0], [1], [0, 0, 1, 1], [], []>} : vector<16x32xbf16>, vector<32x32xbf16>, vector<16x32xf32> -> vector<16x32xf32>
    %240 = vector.extract_strided_slice %1 {offsets = [1, 0], sizes = [1, 32], strides = [1, 1]} : vector<2x32xf32> to vector<1x32xf32>
    %241 = vector.broadcast %240 : vector<1x32xf32> to vector<16x32xf32>
    %242 = arith.addf %239, %241 : vector<16x32xf32>
    %cst_77 = arith.constant 0.000000e+00 : f32
    %243 = vector.broadcast %cst_77 : f32 to vector<16x32xf32>
    %244 = arith.maximumf %242, %243 : vector<16x32xf32>
    %c1_78 = arith.constant 1 : index
    %c0_79 = arith.constant 0 : index
    %c0_80 = arith.constant 0 : index
    %245 = vector.load %arg7[%c1_78, %c0_79, %c0_80] : memref<2x32x32xbf16, #tpu.memory_space<vmem>>, vector<1x32x32xbf16>
    %246 = vector.shape_cast %245 : vector<1x32x32xbf16> to vector<32x32xbf16>
    %247 = arith.truncf %244 : vector<16x32xf32> to vector<16x32xbf16>
    %cst_81 = arith.constant dense<0.000000e+00> : vector<16x32xf32>
    %248 = tpu.matmul %247, %246, %cst_81 {dimension_numbers = #tpu.dot_dimension_numbers<[1], [0], [0], [1], [0, 0, 1, 1], [], []>} : vector<16x32xbf16>, vector<32x32xbf16>, vector<16x32xf32> -> vector<16x32xf32>
    %249 = vector.extract_strided_slice %0 {offsets = [19, 0], sizes = [1, 32], strides = [1, 1]} : vector<29x32xf32> to vector<1x32xf32>
    %250 = vector.broadcast %249 : vector<1x32xf32> to vector<16x32xf32>
    %251 = arith.addf %248, %250 : vector<16x32xf32>
    %252 = arith.addf %235, %251 : vector<16x32xf32>
    %253 = vector.extract_strided_slice %0 {offsets = [22, 0], sizes = [1, 32], strides = [1, 1]} : vector<29x32xf32> to vector<1x32xf32>
    %254 = vector.extract_strided_slice %0 {offsets = [23, 0], sizes = [1, 32], strides = [1, 1]} : vector<29x32xf32> to vector<1x32xf32>
    %cst_82 = arith.constant dense<0.000000e+00> : vector<16xf32>
    %255 = vector.multi_reduction <add>, %252, %cst_82 [1] : vector<16x32xf32> to vector<16xf32>
    %256 = vector.shape_cast %255 : vector<16xf32> to vector<16x1xf32>
    %cst_83 = arith.constant 3.200000e+01 : f32
    %257 = vector.broadcast %cst_83 : f32 to vector<16x1xf32>
    %258 = arith.divf %256, %257 : vector<16x1xf32>
    %259 = vector.broadcast %258 : vector<16x1xf32> to vector<16x32xf32>
    %260 = arith.subf %252, %259 : vector<16x32xf32>
    %261 = arith.mulf %260, %260 : vector<16x32xf32>
    %cst_84 = arith.constant dense<0.000000e+00> : vector<16xf32>
    %262 = vector.multi_reduction <add>, %261, %cst_84 [1] : vector<16x32xf32> to vector<16xf32>
    %263 = vector.shape_cast %262 : vector<16xf32> to vector<16x1xf32>
    %cst_85 = arith.constant 3.200000e+01 : f32
    %264 = vector.broadcast %cst_85 : f32 to vector<16x1xf32>
    %265 = arith.divf %263, %264 : vector<16x1xf32>
    %266 = vector.broadcast %258 : vector<16x1xf32> to vector<16x32xf32>
    %267 = arith.subf %252, %266 : vector<16x32xf32>
    %cst_86 = arith.constant 9.99999974E-6 : f32
    %268 = vector.broadcast %cst_86 : f32 to vector<16x1xf32>
    %269 = arith.addf %265, %268 : vector<16x1xf32>
    %270 = math.rsqrt %269 : vector<16x1xf32>
    %271 = vector.broadcast %270 : vector<16x1xf32> to vector<16x32xf32>
    %272 = arith.mulf %267, %271 : vector<16x32xf32>
    %273 = vector.broadcast %253 : vector<1x32xf32> to vector<16x32xf32>
    %274 = arith.mulf %272, %273 : vector<16x32xf32>
    %275 = vector.broadcast %254 : vector<1x32xf32> to vector<16x32xf32>
    %276 = arith.addf %274, %275 : vector<16x32xf32>
    %277 = arith.addf %276, %137 : vector<16x32xf32>
    %278 = vector.extract_strided_slice %0 {offsets = [24, 0], sizes = [1, 32], strides = [1, 1]} : vector<29x32xf32> to vector<1x32xf32>
    %279 = vector.extract_strided_slice %0 {offsets = [27, 0], sizes = [1, 32], strides = [1, 1]} : vector<29x32xf32> to vector<1x32xf32>
    %cst_87 = arith.constant 9.99999974E-6 : f32
    %280 = vector.broadcast %cst_87 : f32 to vector<1x32xf32>
    %281 = arith.addf %279, %280 : vector<1x32xf32>
    %282 = math.rsqrt %281 : vector<1x32xf32>
    %283 = arith.mulf %278, %282 : vector<1x32xf32>
    %284 = vector.extract_strided_slice %0 {offsets = [26, 0], sizes = [1, 32], strides = [1, 1]} : vector<29x32xf32> to vector<1x32xf32>
    %285 = vector.broadcast %284 : vector<1x32xf32> to vector<16x32xf32>
    %286 = arith.subf %277, %285 : vector<16x32xf32>
    %287 = vector.broadcast %283 : vector<1x32xf32> to vector<16x32xf32>
    %288 = arith.mulf %286, %287 : vector<16x32xf32>
    %289 = vector.extract_strided_slice %0 {offsets = [25, 0], sizes = [1, 32], strides = [1, 1]} : vector<29x32xf32> to vector<1x32xf32>
    %290 = vector.broadcast %289 : vector<1x32xf32> to vector<16x32xf32>
    %291 = arith.addf %288, %290 : vector<16x32xf32>
    %cst_88 = arith.constant 0.000000e+00 : f32
    %292 = vector.broadcast %cst_88 : f32 to vector<16x32xf32>
    %293 = arith.maximumf %291, %292 : vector<16x32xf32>
    %294 = vector.shape_cast %293 : vector<16x32xf32> to vector<2x8x32xf32>
    %295 = vector.extract_strided_slice %294 {offsets = [0, 0, 0], sizes = [2, 1, 32], strides = [1, 1, 1]} : vector<2x8x32xf32> to vector<2x1x32xf32>
    %296 = vector.shape_cast %295 : vector<2x1x32xf32> to vector<2x32xf32>
    %c0_89 = arith.constant 0 : index
    %c0_90 = arith.constant 0 : index
    %297 = vector.load %arg16[%c0_89, %c0_90] : memref<2x256xf32, #tpu.memory_space<vmem>>, vector<2x32xf32>
    tpu.vector_store %arg16[%c0_89, %c0_90], %296 {strides = array<i32>} : memref<2x256xf32, #tpu.memory_space<vmem>>, vector<2x32xf32>,
    %298 = vector.extract_strided_slice %294 {offsets = [0, 1, 0], sizes = [2, 1, 32], strides = [1, 1, 1]} : vector<2x8x32xf32> to vector<2x1x32xf32>
    %299 = vector.shape_cast %298 : vector<2x1x32xf32> to vector<2x32xf32>
    %c0_91 = arith.constant 0 : index
    %c32 = arith.constant 32 : index
    %300 = vector.load %arg16[%c0_91, %c32] : memref<2x256xf32, #tpu.memory_space<vmem>>, vector<2x32xf32>
    tpu.vector_store %arg16[%c0_91, %c32], %299 {strides = array<i32>} : memref<2x256xf32, #tpu.memory_space<vmem>>, vector<2x32xf32>,
    %301 = vector.extract_strided_slice %294 {offsets = [0, 2, 0], sizes = [2, 1, 32], strides = [1, 1, 1]} : vector<2x8x32xf32> to vector<2x1x32xf32>
    %302 = vector.shape_cast %301 : vector<2x1x32xf32> to vector<2x32xf32>
    %c0_92 = arith.constant 0 : index
    %c64 = arith.constant 64 : index
    %303 = vector.load %arg16[%c0_92, %c64] : memref<2x256xf32, #tpu.memory_space<vmem>>, vector<2x32xf32>
    tpu.vector_store %arg16[%c0_92, %c64], %302 {strides = array<i32>} : memref<2x256xf32, #tpu.memory_space<vmem>>, vector<2x32xf32>,
    %304 = vector.extract_strided_slice %294 {offsets = [0, 3, 0], sizes = [2, 1, 32], strides = [1, 1, 1]} : vector<2x8x32xf32> to vector<2x1x32xf32>
    %305 = vector.shape_cast %304 : vector<2x1x32xf32> to vector<2x32xf32>
    %c0_93 = arith.constant 0 : index
    %c96 = arith.constant 96 : index
    %306 = vector.load %arg16[%c0_93, %c96] : memref<2x256xf32, #tpu.memory_space<vmem>>, vector<2x32xf32>
    tpu.vector_store %arg16[%c0_93, %c96], %305 {strides = array<i32>} : memref<2x256xf32, #tpu.memory_space<vmem>>, vector<2x32xf32>,
    %307 = vector.extract_strided_slice %294 {offsets = [0, 4, 0], sizes = [2, 1, 32], strides = [1, 1, 1]} : vector<2x8x32xf32> to vector<2x1x32xf32>
    %308 = vector.shape_cast %307 : vector<2x1x32xf32> to vector<2x32xf32>
    %c0_94 = arith.constant 0 : index
    %c128 = arith.constant 128 : index
    %309 = vector.load %arg16[%c0_94, %c128] : memref<2x256xf32, #tpu.memory_space<vmem>>, vector<2x32xf32>
    tpu.vector_store %arg16[%c0_94, %c128], %308 {strides = array<i32>} : memref<2x256xf32, #tpu.memory_space<vmem>>, vector<2x32xf32>,
    %310 = vector.extract_strided_slice %294 {offsets = [0, 5, 0], sizes = [2, 1, 32], strides = [1, 1, 1]} : vector<2x8x32xf32> to vector<2x1x32xf32>
    %311 = vector.shape_cast %310 : vector<2x1x32xf32> to vector<2x32xf32>
    %c0_95 = arith.constant 0 : index
    %c160 = arith.constant 160 : index
    %312 = vector.load %arg16[%c0_95, %c160] : memref<2x256xf32, #tpu.memory_space<vmem>>, vector<2x32xf32>
    tpu.vector_store %arg16[%c0_95, %c160], %311 {strides = array<i32>} : memref<2x256xf32, #tpu.memory_space<vmem>>, vector<2x32xf32>,
    %313 = vector.extract_strided_slice %294 {offsets = [0, 6, 0], sizes = [2, 1, 32], strides = [1, 1, 1]} : vector<2x8x32xf32> to vector<2x1x32xf32>
    %314 = vector.shape_cast %313 : vector<2x1x32xf32> to vector<2x32xf32>
    %c0_96 = arith.constant 0 : index
    %c192 = arith.constant 192 : index
    %315 = vector.load %arg16[%c0_96, %c192] : memref<2x256xf32, #tpu.memory_space<vmem>>, vector<2x32xf32>
    tpu.vector_store %arg16[%c0_96, %c192], %314 {strides = array<i32>} : memref<2x256xf32, #tpu.memory_space<vmem>>, vector<2x32xf32>,
    %316 = vector.extract_strided_slice %294 {offsets = [0, 7, 0], sizes = [2, 1, 32], strides = [1, 1, 1]} : vector<2x8x32xf32> to vector<2x1x32xf32>
    %317 = vector.shape_cast %316 : vector<2x1x32xf32> to vector<2x32xf32>
    %c0_97 = arith.constant 0 : index
    %c224 = arith.constant 224 : index
    %318 = vector.load %arg16[%c0_97, %c224] : memref<2x256xf32, #tpu.memory_space<vmem>>, vector<2x32xf32>
    tpu.vector_store %arg16[%c0_97, %c224], %317 {strides = array<i32>} : memref<2x256xf32, #tpu.memory_space<vmem>>, vector<2x32xf32>,
    %c0_98 = arith.constant 0 : index
    %c0_99 = arith.constant 0 : index
    %319 = vector.load %arg16[%c0_98, %c0_99] : memref<2x256xf32, #tpu.memory_space<vmem>>, vector<2x256xf32>
    %c0_100 = arith.constant 0 : index
    %c0_101 = arith.constant 0 : index
    %320 = vector.load %arg14[%c0_100, %c0_101] : memref<3x128xf32, #tpu.memory_space<vmem>>, vector<3x128xf32>
    %c0_102 = arith.constant 0 : index
    %c0_103 = arith.constant 0 : index
    %321 = vector.load %arg11[%c0_102, %c0_103] : memref<256x128xbf16, #tpu.memory_space<vmem>>, vector<256x128xbf16>
    %322 = arith.truncf %319 : vector<2x256xf32> to vector<2x256xbf16>
    %cst_104 = arith.constant dense<0.000000e+00> : vector<2x128xf32>
    %323 = tpu.matmul %322, %321, %cst_104 {dimension_numbers = #tpu.dot_dimension_numbers<[1], [0], [0], [1], [0, 0, 1, 1], [], []>} : vector<2x256xbf16>, vector<256x128xbf16>, vector<2x128xf32> -> vector<2x128xf32>
    %324 = vector.extract_strided_slice %320 {offsets = [0, 0], sizes = [1, 128], strides = [1, 1]} : vector<3x128xf32> to vector<1x128xf32>
    %325 = vector.broadcast %324 : vector<1x128xf32> to vector<2x128xf32>
    %326 = arith.addf %323, %325 : vector<2x128xf32>
    %cst_105 = arith.constant 0.000000e+00 : f32
    %327 = vector.broadcast %cst_105 : f32 to vector<2x128xf32>
    %328 = arith.maximumf %326, %327 : vector<2x128xf32>
    %c0_106 = arith.constant 0 : index
    %c0_107 = arith.constant 0 : index
    %329 = vector.load %arg12[%c0_106, %c0_107] : memref<128x128xbf16, #tpu.memory_space<vmem>>, vector<128x128xbf16>
    %330 = arith.truncf %328 : vector<2x128xf32> to vector<2x128xbf16>
    %cst_108 = arith.constant dense<0.000000e+00> : vector<2x128xf32>
    %331 = tpu.matmul %330, %329, %cst_108 {dimension_numbers = #tpu.dot_dimension_numbers<[1], [0], [0], [1], [0, 0, 1, 1], [], []>} : vector<2x128xbf16>, vector<128x128xbf16>, vector<2x128xf32> -> vector<2x128xf32>
    %332 = vector.extract_strided_slice %320 {offsets = [1, 0], sizes = [1, 128], strides = [1, 1]} : vector<3x128xf32> to vector<1x128xf32>
    %333 = vector.broadcast %332 : vector<1x128xf32> to vector<2x128xf32>
    %334 = arith.addf %331, %333 : vector<2x128xf32>
    %cst_109 = arith.constant 0.000000e+00 : f32
    %335 = vector.broadcast %cst_109 : f32 to vector<2x128xf32>
    %336 = arith.maximumf %334, %335 : vector<2x128xf32>
    %c0_110 = arith.constant 0 : index
    %c0_111 = arith.constant 0 : index
    %337 = vector.load %arg13[%c0_110, %c0_111] : memref<128x128xbf16, #tpu.memory_space<vmem>>, vector<128x128xbf16>
    %338 = arith.truncf %336 : vector<2x128xf32> to vector<2x128xbf16>
    %cst_112 = arith.constant dense<0.000000e+00> : vector<2x128xf32>
    %339 = tpu.matmul %338, %337, %cst_112 {dimension_numbers = #tpu.dot_dimension_numbers<[1], [0], [0], [1], [0, 0, 1, 1], [], []>} : vector<2x128xbf16>, vector<128x128xbf16>, vector<2x128xf32> -> vector<2x128xf32>
    %340 = vector.extract_strided_slice %320 {offsets = [2, 0], sizes = [1, 128], strides = [1, 1]} : vector<3x128xf32> to vector<1x128xf32>
    %341 = vector.broadcast %340 : vector<1x128xf32> to vector<2x128xf32>
    %342 = arith.addf %339, %341 : vector<2x128xf32>
    %c0_113 = arith.constant 0 : index
    %c0_114 = arith.constant 0 : index
    %343 = vector.load %arg15[%c0_113, %c0_114] : memref<2x128xf32, #tpu.memory_space<vmem>>, vector<2x128xf32>
    tpu.vector_store %arg15[%c0_113, %c0_114], %342 {strides = array<i32>} : memref<2x128xf32, #tpu.memory_space<vmem>>, vector<2x128xf32>,
    return
  }
  func.func @transform_0(%arg0: i32) -> (i32, i32) {
    %c0_i32 = arith.constant 0 : i32
    %c0_i32_0 = arith.constant 0 : i32
    %c0_i32_1 = arith.constant 0 : i32
    return %c0_i32, %c0_i32_0 : i32, i32
  }
  func.func @transform_1(%arg0: i32) -> (i32, i32, i32) {
    %c0_i32 = arith.constant 0 : i32
    %c0_i32_0 = arith.constant 0 : i32
    %c0_i32_1 = arith.constant 0 : i32
    return %arg0, %c0_i32, %c0_i32_0 : i32, i32, i32
  }
  func.func @transform_2(%arg0: i32) -> (i32, i32, i32) {
    %c0_i32 = arith.constant 0 : i32
    %c0_i32_0 = arith.constant 0 : i32
    %c0_i32_1 = arith.constant 0 : i32
    %c0_i32_2 = arith.constant 0 : i32
    return %c0_i32, %c0_i32_0, %c0_i32_1 : i32, i32, i32
  }
  func.func @transform_3(%arg0: i32) -> (i32, i32, i32) {
    %c0_i32 = arith.constant 0 : i32
    %c0_i32_0 = arith.constant 0 : i32
    %c0_i32_1 = arith.constant 0 : i32
    %c0_i32_2 = arith.constant 0 : i32
    return %c0_i32, %c0_i32_0, %c0_i32_1 : i32, i32, i32
  }
  func.func @transform_4(%arg0: i32) -> (i32, i32, i32) {
    %c0_i32 = arith.constant 0 : i32
    %c0_i32_0 = arith.constant 0 : i32
    %c0_i32_1 = arith.constant 0 : i32
    %c0_i32_2 = arith.constant 0 : i32
    return %c0_i32, %c0_i32_0, %c0_i32_1 : i32, i32, i32
  }
  func.func @transform_5(%arg0: i32) -> (i32, i32, i32) {
    %c0_i32 = arith.constant 0 : i32
    %c0_i32_0 = arith.constant 0 : i32
    %c0_i32_1 = arith.constant 0 : i32
    %c0_i32_2 = arith.constant 0 : i32
    return %c0_i32, %c0_i32_0, %c0_i32_1 : i32, i32, i32
  }
  func.func @transform_6(%arg0: i32) -> (i32, i32, i32) {
    %c0_i32 = arith.constant 0 : i32
    %c0_i32_0 = arith.constant 0 : i32
    %c0_i32_1 = arith.constant 0 : i32
    %c0_i32_2 = arith.constant 0 : i32
    return %c0_i32, %c0_i32_0, %c0_i32_1 : i32, i32, i32
  }
  func.func @transform_7(%arg0: i32) -> (i32, i32) {
    %c0_i32 = arith.constant 0 : i32
    %c0_i32_0 = arith.constant 0 : i32
    %c0_i32_1 = arith.constant 0 : i32
    return %c0_i32, %c0_i32_0 : i32, i32
  }
  func.func @transform_8(%arg0: i32) -> (i32, i32) {
    %c0_i32 = arith.constant 0 : i32
    %c0_i32_0 = arith.constant 0 : i32
    %c0_i32_1 = arith.constant 0 : i32
    return %c0_i32, %c0_i32_0 : i32, i32
  }
  func.func @transform_9(%arg0: i32) -> (i32, i32) {
    %c0_i32 = arith.constant 0 : i32
    %c0_i32_0 = arith.constant 0 : i32
    %c0_i32_1 = arith.constant 0 : i32
    return %c0_i32, %c0_i32_0 : i32, i32
  }
  func.func @transform_10(%arg0: i32) -> (i32, i32) {
    %c0_i32 = arith.constant 0 : i32
    %c0_i32_0 = arith.constant 0 : i32
    %c0_i32_1 = arith.constant 0 : i32
    return %c0_i32, %c0_i32_0 : i32, i32
  }
  func.func @transform_11(%arg0: i32) -> (i32, i32) {
    %c0_i32 = arith.constant 0 : i32
    %c0_i32_0 = arith.constant 0 : i32
    %c0_i32_1 = arith.constant 0 : i32
    return %c0_i32, %c0_i32_0 : i32, i32
  }
  func.func @transform_12(%arg0: i32) -> (i32, i32) {
    %c0_i32 = arith.constant 0 : i32
    %c0_i32_0 = arith.constant 0 : i32
    %c0_i32_1 = arith.constant 0 : i32
    return %c0_i32, %c0_i32_0 : i32, i32
  }
  func.func @transform_13(%arg0: i32) -> (i32, i32) {
    %c0_i32 = arith.constant 0 : i32
    %c0_i32_0 = arith.constant 0 : i32
    %c0_i32_1 = arith.constant 0 : i32
    return %c0_i32, %c0_i32_0 : i32, i32
  }
  func.func @transform_14(%arg0: i32) -> (i32, i32) {
    %c0_i32 = arith.constant 0 : i32
    %c0_i32_0 = arith.constant 0 : i32
    return %arg0, %c0_i32 : i32, i32
  }
}

</mosaic_0001>

<llo_original>
// kernel: spatiotemp_forward.1
$region0: #{spatiotemp_forward.1}
  #allocation0 [shape = 'u32[]', space=smem, size = 0x4, offset = 0x4, fixed_abs, tag = 'smem constant byte address 0x4 - core index']
  #allocation1 [shape = 'u32[144,128]{1,0:T(1,128)}', space=vmem, size = 0x12000, scoped, tag = 'internal scratch']
  #allocation2 [shape = 'f32[2,256]{1,0:T(2,128)}', space=vmem, size = 0x800, scoped, tag = 'scratch operand']
  %s0 = inlined_call_operand.vmem [shape: f32[8,8], index: 0, kind: input, shape index: {}]
  %s1 = inlined_call_operand.vmem [shape: f32[2,8,32], index: 1, kind: input, shape index: {}]
  %s2 = inlined_call_operand.vmem [shape: bf16[2,32,32], index: 2, kind: input, shape index: {}]
  %s3 = inlined_call_operand.vmem [shape: bf16[2,32,96], index: 3, kind: input, shape index: {}]
  %s4 = inlined_call_operand.vmem [shape: bf16[2,32,32], index: 4, kind: input, shape index: {}]
  %s5 = inlined_call_operand.vmem [shape: bf16[2,32,32], index: 5, kind: input, shape index: {}]
  %s6 = inlined_call_operand.vmem [shape: bf16[2,32,32], index: 6, kind: input, shape index: {}]
  %s7 = inlined_call_operand.vmem [shape: bf16[32,32], index: 7, kind: input, shape index: {}]
  %s8 = inlined_call_operand.vmem [shape: f32[29,32], index: 8, kind: input, shape index: {}]
  %s9 = inlined_call_operand.vmem [shape: f32[2,32], index: 9, kind: input, shape index: {}]
  %s10 = inlined_call_operand.vmem [shape: bf16[256,128], index: 10, kind: input, shape index: {}]
  %s11 = inlined_call_operand.vmem [shape: bf16[128,128], index: 11, kind: input, shape index: {}]
  %s12 = inlined_call_operand.vmem [shape: bf16[128,128], index: 12, kind: input, shape index: {}]
  %s13 = inlined_call_operand.vmem [shape: f32[3,128], index: 13, kind: input, shape index: {}]
  %s14 = inlined_call_operand.hbm [shape: f32[2,128], index: 14, kind: output, shape index: {}]
  %s15 = sld [smem:[#allocation0]]
  $region66: #{spatiotemp_forward.1} parent=0
    _
  %s17 = ssub.s32 1, %s15
  %s18 = scalar_select 0, %s17, %s15
  $region1: #{spatiotemp_forward.1} parent=0
    #allocation3 [shape = 'u8[1024]{0}', space=vmem, size = 0x400, scoped, tag = 'output window, operand 0, single buffered']
    #allocation4 [shape = 's32[1]{0}', space=sflag, size = 0x4, scoped, tag = 'scoped memory for spatiotemp_forward.1']
    %19 = vsyncpa [#allocation4], 0
    // Predicated region
    $region2: #{spatiotemp_forward.1} parent=1 // pred_check
      _
    $region3: #{spatiotemp_forward.1} parent=1 // pred_check_branch
      %21 = sbr.rel (0) target = $region5
    $region4: #{spatiotemp_forward.1} parent=1 // pred_region
      _
    $region5: #{spatiotemp_forward.1} parent=1 // pred_fallthru
      _
    // Predicated region
    $region6: #{spatiotemp_forward.1} parent=1 // pred_check
      _
    $region7: #{spatiotemp_forward.1} parent=1 // pred_check_branch
      %23 = sbr.rel (0) target = $region9
    $region8: #{spatiotemp_forward.1} parent=1 // pred_region
      _
    $region9: #{spatiotemp_forward.1} parent=1 // pred_fallthru
      _
    // Predicated region
    $region10: #{spatiotemp_forward.1} parent=1 // pred_check
      _
    $region11: #{spatiotemp_forward.1} parent=1 // pred_check_branch
      %25 = sbr.rel (0) target = $region13
    $region12: #{spatiotemp_forward.1} parent=1 // pred_region
      _
    $region13: #{spatiotemp_forward.1} parent=1 // pred_fallthru
      _
    // Predicated region
    $region14: #{spatiotemp_forward.1} parent=1 // pred_check
      _
    $region15: #{spatiotemp_forward.1} parent=1 // pred_check_branch
      %27 = sbr.rel (0) target = $region17
    $region16: #{spatiotemp_forward.1} parent=1 // pred_region
      _
    $region17: #{spatiotemp_forward.1} parent=1 // pred_fallthru
      _
    // Predicated region
    $region18: #{spatiotemp_forward.1} parent=1 // pred_check
      _
    $region19: #{spatiotemp_forward.1} parent=1 // pred_check_branch
      %29 = sbr.rel (0) target = $region21
    $region20: #{spatiotemp_forward.1} parent=1 // pred_region
      _
    $region21: #{spatiotemp_forward.1} parent=1 // pred_fallthru
      _
    // Predicated region
    $region22: #{spatiotemp_forward.1} parent=1 // pred_check
      _
    $region23: #{spatiotemp_forward.1} parent=1 // pred_check_branch
      %31 = sbr.rel (0) target = $region25
    $region24: #{spatiotemp_forward.1} parent=1 // pred_region
      _
    $region25: #{spatiotemp_forward.1} parent=1 // pred_fallthru
      _
    // Predicated region
    $region26: #{spatiotemp_forward.1} parent=1 // pred_check
      _
    $region27: #{spatiotemp_forward.1} parent=1 // pred_check_branch
      %33 = sbr.rel (0) target = $region29
    $region28: #{spatiotemp_forward.1} parent=1 // pred_region
      _
    $region29: #{spatiotemp_forward.1} parent=1 // pred_fallthru
      _
    // Predicated region
    $region30: #{spatiotemp_forward.1} parent=1 // pred_check
      _
    $region31: #{spatiotemp_forward.1} parent=1 // pred_check_branch
      %35 = sbr.rel (0) target = $region33
    $region32: #{spatiotemp_forward.1} parent=1 // pred_region
      _
    $region33: #{spatiotemp_forward.1} parent=1 // pred_fallthru
      _
    // Predicated region
    $region34: #{spatiotemp_forward.1} parent=1 // pred_check
      _
    $region35: #{spatiotemp_forward.1} parent=1 // pred_check_branch
      %37 = sbr.rel (0) target = $region37
    $region36: #{spatiotemp_forward.1} parent=1 // pred_region
      _
    $region37: #{spatiotemp_forward.1} parent=1 // pred_fallthru
      _
    // Predicated region
    $region38: #{spatiotemp_forward.1} parent=1 // pred_check
      _
    $region39: #{spatiotemp_forward.1} parent=1 // pred_check_branch
      %39 = sbr.rel (0) target = $region41
    $region40: #{spatiotemp_forward.1} parent=1 // pred_region
      _
    $region41: #{spatiotemp_forward.1} parent=1 // pred_fallthru
      _
    // Predicated region
    $region42: #{spatiotemp_forward.1} parent=1 // pred_check
      _
    $region43: #{spatiotemp_forward.1} parent=1 // pred_check_branch
      %41 = sbr.rel (0) target = $region45
    $region44: #{spatiotemp_forward.1} parent=1 // pred_region
      _
    $region45: #{spatiotemp_forward.1} parent=1 // pred_fallthru
      _
    // Predicated region
    $region46: #{spatiotemp_forward.1} parent=1 // pred_check
      _
    $region47: #{spatiotemp_forward.1} parent=1 // pred_check_branch
      %43 = sbr.rel (0) target = $region49
    $region48: #{spatiotemp_forward.1} parent=1 // pred_region
      _
    $region49: #{spatiotemp_forward.1} parent=1 // pred_fallthru
      _
    // Predicated region
    $region50: #{spatiotemp_forward.1} parent=1 // pred_check
      _
    $region51: #{spatiotemp_forward.1} parent=1 // pred_check_branch
      %45 = sbr.rel (0) target = $region53
    $region52: #{spatiotemp_forward.1} parent=1 // pred_region
      _
    $region53: #{spatiotemp_forward.1} parent=1 // pred_fallthru
      _
    // Predicated region
    $region54: #{spatiotemp_forward.1} parent=1 // pred_check
      _
    $region55: #{spatiotemp_forward.1} parent=1 // pred_check_branch
      %47 = sbr.rel (0) target = $region57
    $region56: #{spatiotemp_forward.1} parent=1 // pred_region
      _
    $region57: #{spatiotemp_forward.1} parent=1 // pred_fallthru
      _
    %v49 = vld [vmem:[%s8] sm:$0xff]
    %v50 = vld [vmem:[%s8 + $0x8] sm:$0xff]
    %v51 = vld [vmem:[%s8 + $0x10] sm:$0xff]
    %v52 = vld [vmem:[%s8 + $0x18] sm:$0x1f]
    %v53 = vld [vmem:[%s9] sm:$0x3]
    %v54 = vld [vmem:[%s0] sm:$0xff]
    %v55 = vpack.c.bf16 %v54, %v54
    %v56 = vld [vmem:[%s1] sm:$0xff]
    %v57 = vld [vmem:[%s1 + $0x8] sm:$0xff]
    %v58 = vpack.c.bf16 %v56, %v56
    %v59 = vpack.c.bf16 %v57, %v57
    %vm60 = vcmask 64512
    %v62 = vsel %vm60, %v55, 0
    %vm64 = vcmask 1043456
    %v66 = vsel %vm64, %v58, 0
    %68 = vmatprep.subr.bf16.mxu0 0
    %69 = vmatpush1.bf16.msra.mxu0 %v66
    %70 = vmatprep.subr.bf16.mxu0 0
    %71 = vmatpush1.bf16.msra.mxu0 0
    %72 = vmatprep.subr.bf16.mxu0 0
    %73 = vmatpush1.bf16.msra.mxu0 0
    %74 = vmatprep.subr.bf16.mxu0 0
    %75 = vmatpush1.bf16.msra.mxu0 0
    %76 = vmatprep.subr.bf16.mxu0 0
    %77 = vmatpush1.bf16.msra.mxu0 0
    %78 = vmatprep.subr.bf16.mxu0 0
    %79 = vmatpush1.bf16.msra.mxu0 0
    %80 = vmatprep.subr.bf16.mxu0 0
    %81 = vmatpush1.bf16.msra.mxu0 0
    %82 = vmatprep.subr.bf16.mxu0 0
    %83 = vmatpush1.bf16.msra.mxu0 0
    %84 = vmatprep.subr.bf16.mxu0 0
    %85 = vmatpush1.bf16.msra.mxu0 0
    %86 = vmatprep.subr.bf16.mxu0 0
    %87 = vmatpush1.bf16.msra.mxu0 0
    %88 = vmatprep.subr.bf16.mxu0 0
    %89 = vmatpush1.bf16.msra.mxu0 0
    %90 = vmatprep.subr.bf16.mxu0 0
    %91 = vmatpush1.bf16.msra.mxu0 0
    %92 = vmatprep.subr.bf16.mxu0 0
    %93 = vmatpush1.bf16.msra.mxu0 0
    %94 = vmatprep.subr.bf16.mxu0 0
    %95 = vmatpush1.bf16.msra.mxu0 0
    %96 = vmatprep.subr.bf16.mxu0 0
    %97 = vmatpush1.bf16.msra.mxu0 0
    %98 = vmatprep.subr.bf16.mxu0 0
    %99 = vmatpush1.bf16.msra.mxu0 0
    %100 = vmatprep.mubr.bf16.mxu0 0
    %101 = vmatmul.mubr.bf16.gmra.mrb[0].mxu0 %v62
    %v102 = vpop.f32.mrb[0].mxu0
    %v103 = vadd.f32 0.0, %v102
    %v104 = vpop.f32.mrb[0].mxu0
    %v105 = vpop.f32.mrb[0].mxu0
    %v106 = vpop.f32.mrb[0].mxu0
    %107 = vdwg.mxu0
    %v109 = vsel %vm64, %v59, 0
    %111 = vmatprep.subr.bf16.mxu0 0
    %112 = vmatpush1.bf16.msra.mxu0 %v109
    %113 = vmatprep.subr.bf16.mxu0 0
    %114 = vmatpush1.bf16.msra.mxu0 0
    %115 = vmatprep.subr.bf16.mxu0 0
    %116 = vmatpush1.bf16.msra.mxu0 0
    %117 = vmatprep.subr.bf16.mxu0 0
    %118 = vmatpush1.bf16.msra.mxu0 0
    %119 = vmatprep.subr.bf16.mxu0 0
    %120 = vmatpush1.bf16.msra.mxu0 0
    %121 = vmatprep.subr.bf16.mxu0 0
    %122 = vmatpush1.bf16.msra.mxu0 0
    %123 = vmatprep.subr.bf16.mxu0 0
    %124 = vmatpush1.bf16.msra.mxu0 0
    %125 = vmatprep.subr.bf16.mxu0 0
    %126 = vmatpush1.bf16.msra.mxu0 0
    %127 = vmatprep.subr.bf16.mxu0 0
    %128 = vmatpush1.bf16.msra.mxu0 0
    %129 = vmatprep.subr.bf16.mxu0 0
    %130 = vmatpush1.bf16.msra.mxu0 0
    %131 = vmatprep.subr.bf16.mxu0 0
    %132 = vmatpush1.bf16.msra.mxu0 0
    %133 = vmatprep.subr.bf16.mxu0 0
    %134 = vmatpush1.bf16.msra.mxu0 0
    %135 = vmatprep.subr.bf16.mxu0 0
    %136 = vmatpush1.bf16.msra.mxu0 0
    %137 = vmatprep.subr.bf16.mxu0 0
    %138 = vmatpush1.bf16.msra.mxu0 0
    %139 = vmatprep.subr.bf16.mxu0 0
    %140 = vmatpush1.bf16.msra.mxu0 0
    %141 = vmatprep.subr.bf16.mxu0 0
    %142 = vmatpush1.bf16.msra.mxu0 0
    %143 = vmatprep.mubr.bf16.mxu0 0
    %144 = vmatmul.mubr.bf16.gmra.mrb[0].mxu0 %v62
    %v145 = vpop.f32.mrb[0].mxu0
    %v146 = vadd.f32 0.0, %v145
    %v147 = vpop.f32.mrb[0].mxu0
    %v148 = vpop.f32.mrb[0].mxu0
    %v149 = vpop.f32.mrb[0].mxu0
    %150 = vdwg.mxu0
    %v151 = vld [vmem:[%s2] sm:$0xf]
    %v152 = vld [vmem:[%s2 + $0x4] sm:$0xf]
    %v153 = vld [vmem:[%s2 + $0x8] sm:$0xf]
    %v154 = vld [vmem:[%s2 + $0xc] sm:$0xf]
    %v155 = vpack.c.bf16 %v146, %v103
    %v156 = vlaneseq
    %v157 = vshrl.u32 %v156, 7
    %v158 = vsub.s32 0, %v157
    %v159 = vrot.slane %v49, %v158
    %v164 = vunpack.c.l.b16 %v151
    %v165 = vunpack.c.l.b16 %v152
    %v166 = vunpack.c.l.b16 %v153
    %v167 = vunpack.c.l.b16 %v154
    %v168 = vpack.c.b16 %v165, %v164
    %v169 = vpack.c.b16 %v167, %v166
    %vm172 = vcmask 261120
    %v174 = vsel %vm172, %v155, 0
    %176 = vmatprep.subr.bf16.mxu0 0
    %177 = vmatpush1.bf16.msra.mxu0 %v168
    %178 = vmatprep.subr.bf16.mxu0 0
    %179 = vmatpush1.bf16.msra.mxu0 %v169
    %180 = vmatprep.subr.bf16.mxu0 0
    %181 = vmatpush1.bf16.msra.mxu0 0
    %182 = vmatprep.subr.bf16.mxu0 0
    %183 = vmatpush1.bf16.msra.mxu0 0
    %184 = vmatprep.subr.bf16.mxu0 0
    %185 = vmatpush1.bf16.msra.mxu0 0
    %186 = vmatprep.subr.bf16.mxu0 0
    %187 = vmatpush1.bf16.msra.mxu0 0
    %188 = vmatprep.subr.bf16.mxu0 0
    %189 = vmatpush1.bf16.msra.mxu0 0
    %190 = vmatprep.subr.bf16.mxu0 0
    %191 = vmatpush1.bf16.msra.mxu0 0
    %192 = vmatprep.subr.bf16.mxu0 0
    %193 = vmatpush1.bf16.msra.mxu0 0
    %194 = vmatprep.subr.bf16.mxu0 0
    %195 = vmatpush1.bf16.msra.mxu0 0
    %196 = vmatprep.subr.bf16.mxu0 0
    %197 = vmatpush1.bf16.msra.mxu0 0
    %198 = vmatprep.subr.bf16.mxu0 0
    %199 = vmatpush1.bf16.msra.mxu0 0
    %200 = vmatprep.subr.bf16.mxu0 0
    %201 = vmatpush1.bf16.msra.mxu0 0
    %202 = vmatprep.subr.bf16.mxu0 0
    %203 = vmatpush1.bf16.msra.mxu0 0
    %204 = vmatprep.subr.bf16.mxu0 0
    %205 = vmatpush1.bf16.msra.mxu0 0
    %206 = vmatprep.subr.bf16.mxu0 0
    %207 = vmatpush1.bf16.msra.mxu0 0
    %208 = vmatprep.mubr.bf16.mxu0 0
    %209 = vmatmul.mubr.bf16.gmra.mrb[0].mxu0 %v174
    %v210 = vpop.f32.mrb[0].mxu0
    %v211 = vadd.f32 %v159, %v210
    %v212 = vpop.f32.mrb[0].mxu0
    %v213 = vpop.f32.mrb[0].mxu0
    %v214 = vadd.f32 %v159, %v213
    %v215 = vpop.f32.mrb[0].mxu0
    %216 = vdwg.mxu0
    %v217 = vmax.f32 %v211, 0.0
    %v218 = vmax.f32 %v214, 0.0
    %v219 = vld [vmem:[%s3] sm:$0xf]
    %v220 = vld [vmem:[%s3 + $0x4] sm:$0xf]
    %v221 = vld [vmem:[%s3 + $0x8] sm:$0xf]
    %v222 = vld [vmem:[%s3 + $0xc] sm:$0xf]
    %v223 = vpack.c.bf16 %v218, %v217
    %v228 = vunpack.c.l.b16 %v219
    %v229 = vunpack.c.l.b16 %v220
    %v230 = vunpack.c.l.b16 %v221
    %v231 = vunpack.c.l.b16 %v222
    %v232 = vpack.c.b16 %v229, %v228
    %v233 = vpack.c.b16 %v231, %v230
    %v237 = vsel %vm172, %v223, 0
    %239 = vmatprep.subr.bf16.mxu0 0
    %240 = vmatpush1.bf16.msra.mxu0 %v232
    %241 = vmatprep.subr.bf16.mxu0 0
    %242 = vmatpush1.bf16.msra.mxu0 %v233
    %243 = vmatprep.subr.bf16.mxu0 0
    %244 = vmatpush1.bf16.msra.mxu0 0
    %245 = vmatprep.subr.bf16.mxu0 0
    %246 = vmatpush1.bf16.msra.mxu0 0
    %247 = vmatprep.subr.bf16.mxu0 0
    %248 = vmatpush1.bf16.msra.mxu0 0
    %249 = vmatprep.subr.bf16.mxu0 0
    %250 = vmatpush1.bf16.msra.mxu0 0
    %251 = vmatprep.subr.bf16.mxu0 0
    %252 = vmatpush1.bf16.msra.mxu0 0
    %253 = vmatprep.subr.bf16.mxu0 0
    %254 = vmatpush1.bf16.msra.mxu0 0
    %255 = vmatprep.subr.bf16.mxu0 0
    %256 = vmatpush1.bf16.msra.mxu0 0
    %257 = vmatprep.subr.bf16.mxu0 0
    %258 = vmatpush1.bf16.msra.mxu0 0
    %259 = vmatprep.subr.bf16.mxu0 0
    %260 = vmatpush1.bf16.msra.mxu0 0
    %261 = vmatprep.subr.bf16.mxu0 0
    %262 = vmatpush1.bf16.msra.mxu0 0
    %263 = vmatprep.subr.bf16.mxu0 0
    %264 = vmatpush1.bf16.msra.mxu0 0
    %265 = vmatprep.subr.bf16.mxu0 0
    %266 = vmatpush1.bf16.msra.mxu0 0
    %267 = vmatprep.subr.bf16.mxu0 0
    %268 = vmatpush1.bf16.msra.mxu0 0
    %269 = vmatprep.subr.bf16.mxu0 0
    %270 = vmatpush1.bf16.msra.mxu0 0
    %271 = vmatprep.mubr.bf16.mxu0 0
    %272 = vmatmul.mubr.bf16.gmra.mrb[0].mxu0 %v237
    %v273 = vpop.f32.mrb[0].mxu0
    %v274 = vadd.f32 0.0, %v273
    %v275 = vpop.f32.mrb[0].mxu0
    %v276 = vpop.f32.mrb[0].mxu0
    %v277 = vadd.f32 0.0, %v276
    %v278 = vpop.f32.mrb[0].mxu0
    %279 = vdwg.mxu0
    %v280 = vlaneseq
    %v281 = vshrl.u32 %v280, 7
    %v282 = vsub.s32 1, %v281
    %v283 = vrot.slane %v49, %v282
    %v284 = vadd.f32 %v274, %v283
    %v285 = vadd.f32 %v277, %v283
    %v286 = vlaneseq
    %v287 = vshrl.u32 %v286, 7
    %v288 = vsub.s32 2, %v287
    %v289 = vrot.slane %v49, %v288
    %291 = vrot.lane.b32.xlu0 %v289, 32
    %v292 = vpop.permute.xlu0 %291
    %v294 = vadd.f32 %v274, %v292
    %v295 = vadd.f32 %v277, %v292
    %v296 = vlaneseq
    %v297 = vshrl.u32 %v296, 7
    %v298 = vsub.s32 3, %v297
    %v299 = vrot.slane %v49, %v298
    %301 = vrot.lane.b32.xlu0 %v299, 64
    %v302 = vpop.permute.xlu0 %301
    %v304 = vadd.f32 %v274, %v302
    %v305 = vadd.f32 %v277, %v302
    %v306 = vpack.c.bf16 %v284, %v284
    %v307 = vpack.c.bf16 %v285, %v285
    %v308 = vpack.c.bf16 %v294, %v294
    %v309 = vpack.c.bf16 %v295, %v295
    %311 = vrot.lane.b32.xlu0 %v308, 96
    %v312 = vpop.permute.xlu0 %311
    %v314 = vsel %vm172, %v306, 0
    %v317 = vsel %vm172, %v312, 0
    %319 = vmatprep.subr.bf16.mxu0 0
    %320 = vmatpush1.bf16.xpose.msra.mxu0 %v317
    %321 = vmatprep.subr.bf16.mxu0 0
    %322 = vmatpush1.bf16.xpose.msra.mxu0 0
    %323 = vmatprep.subr.bf16.mxu0 0
    %324 = vmatpush1.bf16.xpose.msra.mxu0 0
    %325 = vmatprep.subr.bf16.mxu0 0
    %326 = vmatpush1.bf16.xpose.msra.mxu0 0
    %327 = vmatprep.subr.bf16.mxu0 0
    %328 = vmatpush1.bf16.xpose.msra.mxu0 0
    %329 = vmatprep.subr.bf16.mxu0 0
    %330 = vmatpush1.bf16.xpose.msra.mxu0 0
    %331 = vmatprep.subr.bf16.mxu0 0
    %332 = vmatpush1.bf16.xpose.msra.mxu0 0
    %333 = vmatprep.subr.bf16.mxu0 0
    %334 = vmatpush1.bf16.xpose.msra.mxu0 0
    %335 = vmatprep.subr.bf16.mxu0 0
    %336 = vmatpush1.bf16.xpose.msra.mxu0 0
    %337 = vmatprep.subr.bf16.mxu0 0
    %338 = vmatpush1.bf16.xpose.msra.mxu0 0
    %339 = vmatprep.subr.bf16.mxu0 0
    %340 = vmatpush1.bf16.xpose.msra.mxu0 0
    %341 = vmatprep.subr.bf16.mxu0 0
    %342 = vmatpush1.bf16.xpose.msra.mxu0 0
    %343 = vmatprep.subr.bf16.mxu0 0
    %344 = vmatpush1.bf16.xpose.msra.mxu0 0
    %345 = vmatprep.subr.bf16.mxu0 0
    %346 = vmatpush1.bf16.xpose.msra.mxu0 0
    %347 = vmatprep.subr.bf16.mxu0 0
    %348 = vmatpush1.bf16.xpose.msra.mxu0 0
    %349 = vmatprep.subr.bf16.mxu0 0
    %350 = vmatpush1.bf16.xpose.msra.mxu0 0
    %351 = vmatprep.mubr.bf16.mxu0 0
    %352 = vmatmul.mubr.bf16.gmra.mrb[0].mxu0 %v314
    %v353 = vpop.f32.mrb[0].mxu0
    %v354 = vadd.f32 0.0, %v353
    %v355 = vpop.f32.mrb[0].mxu0
    %v356 = vpop.f32.mrb[0].mxu0
    %v357 = vpop.f32.mrb[0].mxu0
    %358 = vdwg.mxu0
    %360 = vrot.lane.b32.xlu0 %v309, 96
    %v361 = vpop.permute.xlu0 %360
    %v363 = vsel %vm172, %v307, 0
    %v366 = vsel %vm172, %v361, 0
    %368 = vmatprep.subr.bf16.mxu0 0
    %369 = vmatpush1.bf16.xpose.msra.mxu0 %v366
    %370 = vmatprep.subr.bf16.mxu0 0
    %371 = vmatpush1.bf16.xpose.msra.mxu0 0
    %372 = vmatprep.subr.bf16.mxu0 0
    %373 = vmatpush1.bf16.xpose.msra.mxu0 0
    %374 = vmatprep.subr.bf16.mxu0 0
    %375 = vmatpush1.bf16.xpose.msra.mxu0 0
    %376 = vmatprep.subr.bf16.mxu0 0
    %377 = vmatpush1.bf16.xpose.msra.mxu0 0
    %378 = vmatprep.subr.bf16.mxu0 0
    %379 = vmatpush1.bf16.xpose.msra.mxu0 0
    %380 = vmatprep.subr.bf16.mxu0 0
    %381 = vmatpush1.bf16.xpose.msra.mxu0 0
    %382 = vmatprep.subr.bf16.mxu0 0
    %383 = vmatpush1.bf16.xpose.msra.mxu0 0
    %384 = vmatprep.subr.bf16.mxu0 0
    %385 = vmatpush1.bf16.xpose.msra.mxu0 0
    %386 = vmatprep.subr.bf16.mxu0 0
    %387 = vmatpush1.bf16.xpose.msra.mxu0 0
    %388 = vmatprep.subr.bf16.mxu0 0
    %389 = vmatpush1.bf16.xpose.msra.mxu0 0
    %390 = vmatprep.subr.bf16.mxu0 0
    %391 = vmatpush1.bf16.xpose.msra.mxu0 0
    %392 = vmatprep.subr.bf16.mxu0 0
    %393 = vmatpush1.bf16.xpose.msra.mxu0 0
    %394 = vmatprep.subr.bf16.mxu0 0
    %395 = vmatpush1.bf16.xpose.msra.mxu0 0
    %396 = vmatprep.subr.bf16.mxu0 0
    %397 = vmatpush1.bf16.xpose.msra.mxu0 0
    %398 = vmatprep.subr.bf16.mxu0 0
    %399 = vmatpush1.bf16.xpose.msra.mxu0 0
    %400 = vmatprep.mubr.bf16.mxu0 0
    %401 = vmatmul.mubr.bf16.gmra.mrb[0].mxu0 %v363
    %v402 = vpop.f32.mrb[0].mxu0
    %v403 = vadd.f32 0.0, %v402
    %v404 = vpop.f32.mrb[0].mxu0
    %v405 = vpop.f32.mrb[0].mxu0
    %v406 = vpop.f32.mrb[0].mxu0
    %407 = vdwg.mxu0
    %v408 = vmul.f32 %v354, 0.17677669
    %v409 = vmul.f32 %v403, 0.17677669
    %v410 = vsel %vm60, %v408, -inf
    %411 = vmax.xlane.f32.xlu0 %v410
    %v412 = vpop.xlane.xlu0 %411
    %v413 = vsel %vm60, %v409, -inf
    %414 = vmax.xlane.f32.xlu0 %v413
    %v415 = vpop.xlane.xlu0 %414
    %v416 = vsub.f32 %v408, %v412
    %v417 = vsub.f32 %v409, %v415
    %v418 = vmul.f32 %v416, 1.442695
    %v419 = vpow.pop %v418
    %v420 = vmul.f32 %v417, 1.442695
    %v421 = vpow.pop %v420
    %v422 = vsel %vm60, %v419, 0.0
    %423 = vadd.xlane.f32.xlu0 %v422
    %v424 = vpop.xlane.xlu0 %423
    %v425 = vsel %vm60, %v421, 0.0
    %426 = vadd.xlane.f32.xlu0 %v425
    %v427 = vpop.xlane.xlu0 %426
    %v428 = vrcp.pop %v424
    %v429 = vmul.f32 %v419, %v428
    %v430 = vrcp.pop %v427
    %v431 = vmul.f32 %v421, %v430
    %v432 = vpack.c.bf16 %v429, %v429
    %v433 = vpack.c.bf16 %v431, %v431
    %v434 = vpack.c.bf16 %v304, %v304
    %v435 = vpack.c.bf16 %v305, %v305
    %437 = vrot.lane.b32.xlu0 %v434, 64
    %v438 = vpop.permute.xlu0 %437
    %v440 = vsel %vm60, %v432, 0
    %v443 = vsel %vm64, %v438, 0
    %445 = vmatprep.subr.bf16.mxu0 0
    %446 = vmatpush1.bf16.msra.mxu0 %v443
    %447 = vmatprep.subr.bf16.mxu0 0
    %448 = vmatpush1.bf16.msra.mxu0 0
    %449 = vmatprep.subr.bf16.mxu0 0
    %450 = vmatpush1.bf16.msra.mxu0 0
    %451 = vmatprep.subr.bf16.mxu0 0
    %452 = vmatpush1.bf16.msra.mxu0 0
    %453 = vmatprep.subr.bf16.mxu0 0
    %454 = vmatpush1.bf16.msra.mxu0 0
    %455 = vmatprep.subr.bf16.mxu0 0
    %456 = vmatpush1.bf16.msra.mxu0 0
    %457 = vmatprep.subr.bf16.mxu0 0
    %458 = vmatpush1.bf16.msra.mxu0 0
    %459 = vmatprep.subr.bf16.mxu0 0
    %460 = vmatpush1.bf16.msra.mxu0 0
    %461 = vmatprep.subr.bf16.mxu0 0
    %462 = vmatpush1.bf16.msra.mxu0 0
    %463 = vmatprep.subr.bf16.mxu0 0
    %464 = vmatpush1.bf16.msra.mxu0 0
    %465 = vmatprep.subr.bf16.mxu0 0
    %466 = vmatpush1.bf16.msra.mxu0 0
    %467 = vmatprep.subr.bf16.mxu0 0
    %468 = vmatpush1.bf16.msra.mxu0 0
    %469 = vmatprep.subr.bf16.mxu0 0
    %470 = vmatpush1.bf16.msra.mxu0 0
    %471 = vmatprep.subr.bf16.mxu0 0
    %472 = vmatpush1.bf16.msra.mxu0 0
    %473 = vmatprep.subr.bf16.mxu0 0
    %474 = vmatpush1.bf16.msra.mxu0 0
    %475 = vmatprep.subr.bf16.mxu0 0
    %476 = vmatpush1.bf16.msra.mxu0 0
    %477 = vmatprep.mubr.bf16.mxu0 0
    %478 = vmatmul.mubr.bf16.gmra.mrb[0].mxu0 %v440
    %v479 = vpop.f32.mrb[0].mxu0
    %v480 = vadd.f32 0.0, %v479
    %v481 = vpop.f32.mrb[0].mxu0
    %v482 = vpop.f32.mrb[0].mxu0
    %v483 = vpop.f32.mrb[0].mxu0
    %484 = vdwg.mxu0
    %486 = vrot.lane.b32.xlu0 %v435, 64
    %v487 = vpop.permute.xlu0 %486
    %v489 = vsel %vm60, %v433, 0
    %v492 = vsel %vm64, %v487, 0
    %494 = vmatprep.subr.bf16.mxu0 0
    %495 = vmatpush1.bf16.msra.mxu0 %v492
    %496 = vmatprep.subr.bf16.mxu0 0
    %497 = vmatpush1.bf16.msra.mxu0 0
    %498 = vmatprep.subr.bf16.mxu0 0
    %499 = vmatpush1.bf16.msra.mxu0 0
    %500 = vmatprep.subr.bf16.mxu0 0
    %501 = vmatpush1.bf16.msra.mxu0 0
    %502 = vmatprep.subr.bf16.mxu0 0
    %503 = vmatpush1.bf16.msra.mxu0 0
    %504 = vmatprep.subr.bf16.mxu0 0
    %505 = vmatpush1.bf16.msra.mxu0 0
    %506 = vmatprep.subr.bf16.mxu0 0
    %507 = vmatpush1.bf16.msra.mxu0 0
    %508 = vmatprep.subr.bf16.mxu0 0
    %509 = vmatpush1.bf16.msra.mxu0 0
    %510 = vmatprep.subr.bf16.mxu0 0
    %511 = vmatpush1.bf16.msra.mxu0 0
    %512 = vmatprep.subr.bf16.mxu0 0
    %513 = vmatpush1.bf16.msra.mxu0 0
    %514 = vmatprep.subr.bf16.mxu0 0
    %515 = vmatpush1.bf16.msra.mxu0 0
    %516 = vmatprep.subr.bf16.mxu0 0
    %517 = vmatpush1.bf16.msra.mxu0 0
    %518 = vmatprep.subr.bf16.mxu0 0
    %519 = vmatpush1.bf16.msra.mxu0 0
    %520 = vmatprep.subr.bf16.mxu0 0
    %521 = vmatpush1.bf16.msra.mxu0 0
    %522 = vmatprep.subr.bf16.mxu0 0
    %523 = vmatpush1.bf16.msra.mxu0 0
    %524 = vmatprep.subr.bf16.mxu0 0
    %525 = vmatpush1.bf16.msra.mxu0 0
    %526 = vmatprep.mubr.bf16.mxu0 0
    %527 = vmatmul.mubr.bf16.gmra.mrb[0].mxu0 %v489
    %v528 = vpop.f32.mrb[0].mxu0
    %v529 = vadd.f32 0.0, %v528
    %v530 = vpop.f32.mrb[0].mxu0
    %v531 = vpop.f32.mrb[0].mxu0
    %v532 = vpop.f32.mrb[0].mxu0
    %533 = vdwg.mxu0
    %v534 = vld [vmem:[%s4] sm:$0xf]
    %v535 = vld [vmem:[%s4 + $0x4] sm:$0xf]
    %v536 = vld [vmem:[%s4 + $0x8] sm:$0xf]
    %v537 = vld [vmem:[%s4 + $0xc] sm:$0xf]
    %v538 = vpack.c.bf16 %v529, %v480
    %v539 = vlaneseq
    %v540 = vshrl.u32 %v539, 7
    %v541 = vsub.s32 4, %v540
    %v542 = vrot.slane %v49, %v541
    %v547 = vunpack.c.l.b16 %v534
    %v548 = vunpack.c.l.b16 %v535
    %v549 = vunpack.c.l.b16 %v536
    %v550 = vunpack.c.l.b16 %v537
    %v551 = vpack.c.b16 %v548, %v547
    %v552 = vpack.c.b16 %v550, %v549
    %v556 = vsel %vm172, %v538, 0
    %558 = vmatprep.subr.bf16.mxu0 0
    %559 = vmatpush1.bf16.msra.mxu0 %v551
    %560 = vmatprep.subr.bf16.mxu0 0
    %561 = vmatpush1.bf16.msra.mxu0 %v552
    %562 = vmatprep.subr.bf16.mxu0 0
    %563 = vmatpush1.bf16.msra.mxu0 0
    %564 = vmatprep.subr.bf16.mxu0 0
    %565 = vmatpush1.bf16.msra.mxu0 0
    %566 = vmatprep.subr.bf16.mxu0 0
    %567 = vmatpush1.bf16.msra.mxu0 0
    %568 = vmatprep.subr.bf16.mxu0 0
    %569 = vmatpush1.bf16.msra.mxu0 0
    %570 = vmatprep.subr.bf16.mxu0 0
    %571 = vmatpush1.bf16.msra.mxu0 0
    %572 = vmatprep.subr.bf16.mxu0 0
    %573 = vmatpush1.bf16.msra.mxu0 0
    %574 = vmatprep.subr.bf16.mxu0 0
    %575 = vmatpush1.bf16.msra.mxu0 0
    %576 = vmatprep.subr.bf16.mxu0 0
    %577 = vmatpush1.bf16.msra.mxu0 0
    %578 = vmatprep.subr.bf16.mxu0 0
    %579 = vmatpush1.bf16.msra.mxu0 0
    %580 = vmatprep.subr.bf16.mxu0 0
    %581 = vmatpush1.bf16.msra.mxu0 0
    %582 = vmatprep.subr.bf16.mxu0 0
    %583 = vmatpush1.bf16.msra.mxu0 0
    %584 = vmatprep.subr.bf16.mxu0 0
    %585 = vmatpush1.bf16.msra.mxu0 0
    %586 = vmatprep.subr.bf16.mxu0 0
    %587 = vmatpush1.bf16.msra.mxu0 0
    %588 = vmatprep.subr.bf16.mxu0 0
    %589 = vmatpush1.bf16.msra.mxu0 0
    %590 = vmatprep.mubr.bf16.mxu0 0
    %591 = vmatmul.mubr.bf16.gmra.mrb[0].mxu0 %v556
    %v592 = vpop.f32.mrb[0].mxu0
    %v593 = vadd.f32 %v542, %v592
    %v594 = vpop.f32.mrb[0].mxu0
    %v595 = vpop.f32.mrb[0].mxu0
    %v596 = vadd.f32 %v542, %v595
    %v597 = vpop.f32.mrb[0].mxu0
    %598 = vdwg.mxu0
    %v599 = vadd.f32 %v217, %v593
    %v600 = vadd.f32 %v218, %v596
    %v601 = vsel %vm172, %v599, 0.0
    %602 = vadd.xlane.f32.xlu0 %v601
    %v603 = vpop.xlane.xlu0 %602
    %v604 = vsel %vm172, %v600, 0.0
    %605 = vadd.xlane.f32.xlu0 %v604
    %v606 = vpop.xlane.xlu0 %605
    %v607 = vrcp.pop 32.0
    %v608 = vmul.f32 %v603, %v607
    %v609 = vmul.f32 %v606, %v607
    %v610 = vsub.f32 %v599, %v608
    %v611 = vsub.f32 %v600, %v609
    %v612 = vmul.f32 %v610, %v610
    %v613 = vmul.f32 %v611, %v611
    %v614 = vsel %vm172, %v612, 0.0
    %615 = vadd.xlane.f32.xlu0 %v614
    %v616 = vpop.xlane.xlu0 %615
    %v617 = vsel %vm172, %v613, 0.0
    %618 = vadd.xlane.f32.xlu0 %v617
    %v619 = vpop.xlane.xlu0 %618
    %v620 = vmul.f32 %v616, %v607
    %v621 = vmul.f32 %v619, %v607
    %v622 = vadd.f32 %v620, 1e-05
    %v623 = vadd.f32 %v621, 1e-05
    %v624 = vrsqrt.pop %v622
    %v625 = vrsqrt.pop %v623
    %v626 = vmul.f32 %v610, %v624
    %v627 = vmul.f32 %v611, %v625
    %v628 = vlaneseq
    %v629 = vshrl.u32 %v628, 7
    %v630 = vsub.s32 6, %v629
    %v631 = vrot.slane %v49, %v630
    %v632 = vmul.f32 %v626, %v631
    %v633 = vmul.f32 %v627, %v631
    %v634 = vlaneseq
    %v635 = vshrl.u32 %v634, 7
    %v636 = vsub.s32 7, %v635
    %v637 = vrot.slane %v49, %v636
    %v638 = vadd.f32 %v632, %v637
    %v639 = vadd.f32 %v633, %v637
    %v640 = vld [vmem:[%s5] sm:$0xf]
    %v641 = vld [vmem:[%s5 + $0x4] sm:$0xf]
    %v642 = vld [vmem:[%s5 + $0x8] sm:$0xf]
    %v643 = vld [vmem:[%s5 + $0xc] sm:$0xf]
    %v644 = vpack.c.bf16 %v639, %v638
    %v645 = vlaneseq
    %v646 = vshrl.u32 %v645, 7
    %v647 = vsub.s32 0, %v646
    %v648 = vrot.slane %v53, %v647
    %v653 = vunpack.c.l.b16 %v640
    %v654 = vunpack.c.l.b16 %v641
    %v655 = vunpack.c.l.b16 %v642
    %v656 = vunpack.c.l.b16 %v643
    %v657 = vpack.c.b16 %v654, %v653
    %v658 = vpack.c.b16 %v656, %v655
    %v662 = vsel %vm172, %v644, 0
    %664 = vmatprep.subr.bf16.mxu0 0
    %665 = vmatpush1.bf16.msra.mxu0 %v657
    %666 = vmatprep.subr.bf16.mxu0 0
    %667 = vmatpush1.bf16.msra.mxu0 %v658
    %668 = vmatprep.subr.bf16.mxu0 0
    %669 = vmatpush1.bf16.msra.mxu0 0
    %670 = vmatprep.subr.bf16.mxu0 0
    %671 = vmatpush1.bf16.msra.mxu0 0
    %672 = vmatprep.subr.bf16.mxu0 0
    %673 = vmatpush1.bf16.msra.mxu0 0
    %674 = vmatprep.subr.bf16.mxu0 0
    %675 = vmatpush1.bf16.msra.mxu0 0
    %676 = vmatprep.subr.bf16.mxu0 0
    %677 = vmatpush1.bf16.msra.mxu0 0
    %678 = vmatprep.subr.bf16.mxu0 0
    %679 = vmatpush1.bf16.msra.mxu0 0
    %680 = vmatprep.subr.bf16.mxu0 0
    %681 = vmatpush1.bf16.msra.mxu0 0
    %682 = vmatprep.subr.bf16.mxu0 0
    %683 = vmatpush1.bf16.msra.mxu0 0
    %684 = vmatprep.subr.bf16.mxu0 0
    %685 = vmatpush1.bf16.msra.mxu0 0
    %686 = vmatprep.subr.bf16.mxu0 0
    %687 = vmatpush1.bf16.msra.mxu0 0
    %688 = vmatprep.subr.bf16.mxu0 0
    %689 = vmatpush1.bf16.msra.mxu0 0
    %690 = vmatprep.subr.bf16.mxu0 0
    %691 = vmatpush1.bf16.msra.mxu0 0
    %692 = vmatprep.subr.bf16.mxu0 0
    %693 = vmatpush1.bf16.msra.mxu0 0
    %694 = vmatprep.subr.bf16.mxu0 0
    %695 = vmatpush1.bf16.msra.mxu0 0
    %696 = vmatprep.mubr.bf16.mxu0 0
    %697 = vmatmul.mubr.bf16.gmra.mrb[0].mxu0 %v662
    %v698 = vpop.f32.mrb[0].mxu0
    %v699 = vadd.f32 %v648, %v698
    %v700 = vpop.f32.mrb[0].mxu0
    %v701 = vpop.f32.mrb[0].mxu0
    %v702 = vadd.f32 %v648, %v701
    %v703 = vpop.f32.mrb[0].mxu0
    %704 = vdwg.mxu0
    %v705 = vmax.f32 %v699, 0.0
    %v706 = vmax.f32 %v702, 0.0
    %v707 = vld [vmem:[%s6] sm:$0xf]
    %v708 = vld [vmem:[%s6 + $0x4] sm:$0xf]
    %v709 = vld [vmem:[%s6 + $0x8] sm:$0xf]
    %v710 = vld [vmem:[%s6 + $0xc] sm:$0xf]
    %v711 = vpack.c.bf16 %v706, %v705
    %v712 = vlaneseq
    %v713 = vshrl.u32 %v712, 7
    %v714 = vsub.s32 5, %v713
    %v715 = vrot.slane %v49, %v714
    %v720 = vunpack.c.l.b16 %v707
    %v721 = vunpack.c.l.b16 %v708
    %v722 = vunpack.c.l.b16 %v709
    %v723 = vunpack.c.l.b16 %v710
    %v724 = vpack.c.b16 %v721, %v720
    %v725 = vpack.c.b16 %v723, %v722
    %v729 = vsel %vm172, %v711, 0
    %731 = vmatprep.subr.bf16.mxu0 0
    %732 = vmatpush1.bf16.msra.mxu0 %v724
    %733 = vmatprep.subr.bf16.mxu0 0
    %734 = vmatpush1.bf16.msra.mxu0 %v725
    %735 = vmatprep.subr.bf16.mxu0 0
    %736 = vmatpush1.bf16.msra.mxu0 0
    %737 = vmatprep.subr.bf16.mxu0 0
    %738 = vmatpush1.bf16.msra.mxu0 0
    %739 = vmatprep.subr.bf16.mxu0 0
    %740 = vmatpush1.bf16.msra.mxu0 0
    %741 = vmatprep.subr.bf16.mxu0 0
    %742 = vmatpush1.bf16.msra.mxu0 0
    %743 = vmatprep.subr.bf16.mxu0 0
    %744 = vmatpush1.bf16.msra.mxu0 0
    %745 = vmatprep.subr.bf16.mxu0 0
    %746 = vmatpush1.bf16.msra.mxu0 0
    %747 = vmatprep.subr.bf16.mxu0 0
    %748 = vmatpush1.bf16.msra.mxu0 0
    %749 = vmatprep.subr.bf16.mxu0 0
    %750 = vmatpush1.bf16.msra.mxu0 0
    %751 = vmatprep.subr.bf16.mxu0 0
    %752 = vmatpush1.bf16.msra.mxu0 0
    %753 = vmatprep.subr.bf16.mxu0 0
    %754 = vmatpush1.bf16.msra.mxu0 0
    %755 = vmatprep.subr.bf16.mxu0 0
    %756 = vmatpush1.bf16.msra.mxu0 0
    %757 = vmatprep.subr.bf16.mxu0 0
    %758 = vmatpush1.bf16.msra.mxu0 0
    %759 = vmatprep.subr.bf16.mxu0 0
    %760 = vmatpush1.bf16.msra.mxu0 0
    %761 = vmatprep.subr.bf16.mxu0 0
    %762 = vmatpush1.bf16.msra.mxu0 0
    %763 = vmatprep.mubr.bf16.mxu0 0
    %764 = vmatmul.mubr.bf16.gmra.mrb[0].mxu0 %v729
    %v765 = vpop.f32.mrb[0].mxu0
    %v766 = vadd.f32 %v715, %v765
    %v767 = vpop.f32.mrb[0].mxu0
    %v768 = vpop.f32.mrb[0].mxu0
    %v769 = vadd.f32 %v715, %v768
    %v770 = vpop.f32.mrb[0].mxu0
    %771 = vdwg.mxu0
    %v772 = vadd.f32 %v638, %v766
    %v773 = vadd.f32 %v639, %v769
    %v774 = vsel %vm172, %v772, 0.0
    %775 = vadd.xlane.f32.xlu0 %v774
    %v776 = vpop.xlane.xlu0 %775
    %v777 = vsel %vm172, %v773, 0.0
    %778 = vadd.xlane.f32.xlu0 %v777
    %v779 = vpop.xlane.xlu0 %778
    %v780 = vmul.f32 %v776, %v607
    %v781 = vmul.f32 %v779, %v607
    %v782 = vsub.f32 %v772, %v780
    %v783 = vsub.f32 %v773, %v781
    %v784 = vmul.f32 %v782, %v782
    %v785 = vmul.f32 %v783, %v783
    %v786 = vsel %vm172, %v784, 0.0
    %787 = vadd.xlane.f32.xlu0 %v786
    %v788 = vpop.xlane.xlu0 %787
    %v789 = vsel %vm172, %v785, 0.0
    %790 = vadd.xlane.f32.xlu0 %v789
    %v791 = vpop.xlane.xlu0 %790
    %v792 = vmul.f32 %v788, %v607
    %v793 = vmul.f32 %v791, %v607
    %v794 = vadd.f32 %v792, 1e-05
    %v795 = vadd.f32 %v793, 1e-05
    %v796 = vrsqrt.pop %v794
    %v797 = vrsqrt.pop %v795
    %v798 = vmul.f32 %v782, %v796
    %v799 = vmul.f32 %v783, %v797
    %v800 = vlaneseq
    %v801 = vshrl.u32 %v800, 7
    %v802 = vsub.s32 0, %v801
    %v803 = vrot.slane %v50, %v802
    %v804 = vmul.f32 %v798, %v803
    %v805 = vmul.f32 %v799, %v803
    %v806 = vlaneseq
    %v807 = vshrl.u32 %v806, 7
    %v808 = vsub.s32 1, %v807
    %v809 = vrot.slane %v50, %v808
    %v810 = vadd.f32 %v804, %v809
    %v811 = vadd.f32 %v805, %v809
    %v812 = vld [vmem:[%s7] sm:$0xf]
    %v813 = vld [vmem:[%s7 + $0x4] sm:$0xf]
    %v814 = vld [vmem:[%s7 + $0x8] sm:$0xf]
    %v815 = vld [vmem:[%s7 + $0xc] sm:$0xf]
    %v816 = vpack.c.bf16 %v57, %v56
    %v817 = vlaneseq
    %v818 = vshrl.u32 %v817, 7
    %v819 = vsub.s32 4, %v818
    %v820 = vrot.slane %v52, %v819
    %v825 = vunpack.c.l.b16 %v812
    %v826 = vunpack.c.l.b16 %v813
    %v827 = vunpack.c.l.b16 %v814
    %v828 = vunpack.c.l.b16 %v815
    %v829 = vpack.c.b16 %v826, %v825
    %v830 = vpack.c.b16 %v828, %v827
    %v834 = vsel %vm172, %v816, 0
    %836 = vmatprep.subr.bf16.mxu0 0
    %837 = vmatpush1.bf16.msra.mxu0 %v829
    %838 = vmatprep.subr.bf16.mxu0 0
    %839 = vmatpush1.bf16.msra.mxu0 %v830
    %840 = vmatprep.subr.bf16.mxu0 0
    %841 = vmatpush1.bf16.msra.mxu0 0
    %842 = vmatprep.subr.bf16.mxu0 0
    %843 = vmatpush1.bf16.msra.mxu0 0
    %844 = vmatprep.subr.bf16.mxu0 0
    %845 = vmatpush1.bf16.msra.mxu0 0
    %846 = vmatprep.subr.bf16.mxu0 0
    %847 = vmatpush1.bf16.msra.mxu0 0
    %848 = vmatprep.subr.bf16.mxu0 0
    %849 = vmatpush1.bf16.msra.mxu0 0
    %850 = vmatprep.subr.bf16.mxu0 0
    %851 = vmatpush1.bf16.msra.mxu0 0
    %852 = vmatprep.subr.bf16.mxu0 0
    %853 = vmatpush1.bf16.msra.mxu0 0
    %854 = vmatprep.subr.bf16.mxu0 0
    %855 = vmatpush1.bf16.msra.mxu0 0
    %856 = vmatprep.subr.bf16.mxu0 0
    %857 = vmatpush1.bf16.msra.mxu0 0
    %858 = vmatprep.subr.bf16.mxu0 0
    %859 = vmatpush1.bf16.msra.mxu0 0
    %860 = vmatprep.subr.bf16.mxu0 0
    %861 = vmatpush1.bf16.msra.mxu0 0
    %862 = vmatprep.subr.bf16.mxu0 0
    %863 = vmatpush1.bf16.msra.mxu0 0
    %864 = vmatprep.subr.bf16.mxu0 0
    %865 = vmatpush1.bf16.msra.mxu0 0
    %866 = vmatprep.subr.bf16.mxu0 0
    %867 = vmatpush1.bf16.msra.mxu0 0
    %868 = vmatprep.mubr.bf16.mxu0 0
    %869 = vmatmul.mubr.bf16.gmra.mrb[0].mxu0 %v834
    %v870 = vpop.f32.mrb[0].mxu0
    %v871 = vadd.f32 %v820, %v870
    %v872 = vpop.f32.mrb[0].mxu0
    %v873 = vpop.f32.mrb[0].mxu0
    %v874 = vadd.f32 %v820, %v873
    %v875 = vpop.f32.mrb[0].mxu0
    %876 = vdwg.mxu0
    %v877 = vadd.f32 %v810, %v871
    %v878 = vadd.f32 %v811, %v874
    %v879 = vadd.f32 %v50, 1e-05
    %v880 = vrsqrt.pop %v879
    %v882 = vrot.slane %v880, 3
    %v884 = vmul.f32 %v50, %v882
    %v885 = vlaneseq
    %v886 = vshrl.u32 %v885, 7
    %v887 = vsub.s32 4, %v886
    %v888 = vrot.slane %v50, %v887
    %v889 = vsub.f32 %v877, %v888
    %v890 = vsub.f32 %v878, %v888
    %v891 = vlaneseq
    %v892 = vshrl.u32 %v891, 7
    %v893 = vsub.s32 2, %v892
    %v894 = vrot.slane %v884, %v893
    %v895 = vmul.f32 %v889, %v894
    %v896 = vmul.f32 %v890, %v894
    %v897 = vlaneseq
    %v898 = vshrl.u32 %v897, 7
    %v899 = vsub.s32 3, %v898
    %v900 = vrot.slane %v50, %v899
    %v901 = vadd.f32 %v895, %v900
    %v902 = vadd.f32 %v896, %v900
    %v903 = vmax.f32 %v901, 0.0
    %v904 = vmax.f32 %v902, 0.0
    %v905 = vpack.c.bf16 %v903, %v903
    %v906 = vpack.c.bf16 %v904, %v904
    %v908 = vsel %vm64, %v905, 0
    %910 = vmatprep.subr.bf16.mxu0 0
    %911 = vmatpush1.bf16.msra.mxu0 %v908
    %912 = vmatprep.subr.bf16.mxu0 0
    %913 = vmatpush1.bf16.msra.mxu0 0
    %914 = vmatprep.subr.bf16.mxu0 0
    %915 = vmatpush1.bf16.msra.mxu0 0
    %916 = vmatprep.subr.bf16.mxu0 0
    %917 = vmatpush1.bf16.msra.mxu0 0
    %918 = vmatprep.subr.bf16.mxu0 0
    %919 = vmatpush1.bf16.msra.mxu0 0
    %920 = vmatprep.subr.bf16.mxu0 0
    %921 = vmatpush1.bf16.msra.mxu0 0
    %922 = vmatprep.subr.bf16.mxu0 0
    %923 = vmatpush1.bf16.msra.mxu0 0
    %924 = vmatprep.subr.bf16.mxu0 0
    %925 = vmatpush1.bf16.msra.mxu0 0
    %926 = vmatprep.subr.bf16.mxu0 0
    %927 = vmatpush1.bf16.msra.mxu0 0
    %928 = vmatprep.subr.bf16.mxu0 0
    %929 = vmatpush1.bf16.msra.mxu0 0
    %930 = vmatprep.subr.bf16.mxu0 0
    %931 = vmatpush1.bf16.msra.mxu0 0
    %932 = vmatprep.subr.bf16.mxu0 0
    %933 = vmatpush1.bf16.msra.mxu0 0
    %934 = vmatprep.subr.bf16.mxu0 0
    %935 = vmatpush1.bf16.msra.mxu0 0
    %936 = vmatprep.subr.bf16.mxu0 0
    %937 = vmatpush1.bf16.msra.mxu0 0
    %938 = vmatprep.subr.bf16.mxu0 0
    %939 = vmatpush1.bf16.msra.mxu0 0
    %940 = vmatprep.subr.bf16.mxu0 0
    %941 = vmatpush1.bf16.msra.mxu0 0
    %942 = vmatprep.mubr.bf16.mxu0 0
    %943 = vmatmul.mubr.bf16.gmra.mrb[0].mxu0 %v62
    %v944 = vpop.f32.mrb[0].mxu0
    %v945 = vadd.f32 0.0, %v944
    %v946 = vpop.f32.mrb[0].mxu0
    %v947 = vpop.f32.mrb[0].mxu0
    %v948 = vpop.f32.mrb[0].mxu0
    %949 = vdwg.mxu0
    %v951 = vsel %vm64, %v906, 0
    %953 = vmatprep.subr.bf16.mxu0 0
    %954 = vmatpush1.bf16.msra.mxu0 %v951
    %955 = vmatprep.subr.bf16.mxu0 0
    %956 = vmatpush1.bf16.msra.mxu0 0
    %957 = vmatprep.subr.bf16.mxu0 0
    %958 = vmatpush1.bf16.msra.mxu0 0
    %959 = vmatprep.subr.bf16.mxu0 0
    %960 = vmatpush1.bf16.msra.mxu0 0
    %961 = vmatprep.subr.bf16.mxu0 0
    %962 = vmatpush1.bf16.msra.mxu0 0
    %963 = vmatprep.subr.bf16.mxu0 0
    %964 = vmatpush1.bf16.msra.mxu0 0
    %965 = vmatprep.subr.bf16.mxu0 0
    %966 = vmatpush1.bf16.msra.mxu0 0
    %967 = vmatprep.subr.bf16.mxu0 0
    %968 = vmatpush1.bf16.msra.mxu0 0
    %969 = vmatprep.subr.bf16.mxu0 0
    %970 = vmatpush1.bf16.msra.mxu0 0
    %971 = vmatprep.subr.bf16.mxu0 0
    %972 = vmatpush1.bf16.msra.mxu0 0
    %973 = vmatprep.subr.bf16.mxu0 0
    %974 = vmatpush1.bf16.msra.mxu0 0
    %975 = vmatprep.subr.bf16.mxu0 0
    %976 = vmatpush1.bf16.msra.mxu0 0
    %977 = vmatprep.subr.bf16.mxu0 0
    %978 = vmatpush1.bf16.msra.mxu0 0
    %979 = vmatprep.subr.bf16.mxu0 0
    %980 = vmatpush1.bf16.msra.mxu0 0
    %981 = vmatprep.subr.bf16.mxu0 0
    %982 = vmatpush1.bf16.msra.mxu0 0
    %983 = vmatprep.subr.bf16.mxu0 0
    %984 = vmatpush1.bf16.msra.mxu0 0
    %985 = vmatprep.mubr.bf16.mxu0 0
    %986 = vmatmul.mubr.bf16.gmra.mrb[0].mxu0 %v62
    %v987 = vpop.f32.mrb[0].mxu0
    %v988 = vadd.f32 0.0, %v987
    %v989 = vpop.f32.mrb[0].mxu0
    %v990 = vpop.f32.mrb[0].mxu0
    %v991 = vpop.f32.mrb[0].mxu0
    %992 = vdwg.mxu0
    %s993 = scalar_lea.vmem %s2, 16
    %v994 = vld [vmem:[%s993] sm:$0xf]
    %v995 = vld [vmem:[%s993 + $0x4] sm:$0xf]
    %v996 = vld [vmem:[%s993 + $0x8] sm:$0xf]
    %v997 = vld [vmem:[%s993 + $0xc] sm:$0xf]
    %v998 = vpack.c.bf16 %v988, %v945
    %v999 = vlaneseq
    %v1000 = vshrl.u32 %v999, 7
    %v1001 = vsub.s32 6, %v1000
    %v1002 = vrot.slane %v50, %v1001
    %v1007 = vunpack.c.l.b16 %v994
    %v1008 = vunpack.c.l.b16 %v995
    %v1009 = vunpack.c.l.b16 %v996
    %v1010 = vunpack.c.l.b16 %v997
    %v1011 = vpack.c.b16 %v1008, %v1007
    %v1012 = vpack.c.b16 %v1010, %v1009
    %v1016 = vsel %vm172, %v998, 0
    %1018 = vmatprep.subr.bf16.mxu0 0
    %1019 = vmatpush1.bf16.msra.mxu0 %v1011
    %1020 = vmatprep.subr.bf16.mxu0 0
    %1021 = vmatpush1.bf16.msra.mxu0 %v1012
    %1022 = vmatprep.subr.bf16.mxu0 0
    %1023 = vmatpush1.bf16.msra.mxu0 0
    %1024 = vmatprep.subr.bf16.mxu0 0
    %1025 = vmatpush1.bf16.msra.mxu0 0
    %1026 = vmatprep.subr.bf16.mxu0 0
    %1027 = vmatpush1.bf16.msra.mxu0 0
    %1028 = vmatprep.subr.bf16.mxu0 0
    %1029 = vmatpush1.bf16.msra.mxu0 0
    %1030 = vmatprep.subr.bf16.mxu0 0
    %1031 = vmatpush1.bf16.msra.mxu0 0
    %1032 = vmatprep.subr.bf16.mxu0 0
    %1033 = vmatpush1.bf16.msra.mxu0 0
    %1034 = vmatprep.subr.bf16.mxu0 0
    %1035 = vmatpush1.bf16.msra.mxu0 0
    %1036 = vmatprep.subr.bf16.mxu0 0
    %1037 = vmatpush1.bf16.msra.mxu0 0
    %1038 = vmatprep.subr.bf16.mxu0 0
    %1039 = vmatpush1.bf16.msra.mxu0 0
    %1040 = vmatprep.subr.bf16.mxu0 0
    %1041 = vmatpush1.bf16.msra.mxu0 0
    %1042 = vmatprep.subr.bf16.mxu0 0
    %1043 = vmatpush1.bf16.msra.mxu0 0
    %1044 = vmatprep.subr.bf16.mxu0 0
    %1045 = vmatpush1.bf16.msra.mxu0 0
    %1046 = vmatprep.subr.bf16.mxu0 0
    %1047 = vmatpush1.bf16.msra.mxu0 0
    %1048 = vmatprep.subr.bf16.mxu0 0
    %1049 = vmatpush1.bf16.msra.mxu0 0
    %1050 = vmatprep.mubr.bf16.mxu0 0
    %1051 = vmatmul.mubr.bf16.gmra.mrb[0].mxu0 %v1016
    %v1052 = vpop.f32.mrb[0].mxu0
    %v1053 = vadd.f32 %v1002, %v1052
    %v1054 = vpop.f32.mrb[0].mxu0
    %v1055 = vpop.f32.mrb[0].mxu0
    %v1056 = vadd.f32 %v1002, %v1055
    %v1057 = vpop.f32.mrb[0].mxu0
    %1058 = vdwg.mxu0
    %v1059 = vmax.f32 %v1053, 0.0
    %v1060 = vmax.f32 %v1056, 0.0
    %s1061 = scalar_lea.vmem %s3, 16
    %v1062 = vld [vmem:[%s1061] sm:$0xf]
    %v1063 = vld [vmem:[%s1061 + $0x4] sm:$0xf]
    %v1064 = vld [vmem:[%s1061 + $0x8] sm:$0xf]
    %v1065 = vld [vmem:[%s1061 + $0xc] sm:$0xf]
    %v1066 = vpack.c.bf16 %v1060, %v1059
    %v1071 = vunpack.c.l.b16 %v1062
    %v1072 = vunpack.c.l.b16 %v1063
    %v1073 = vunpack.c.l.b16 %v1064
    %v1074 = vunpack.c.l.b16 %v1065
    %v1075 = vpack.c.b16 %v1072, %v1071
    %v1076 = vpack.c.b16 %v1074, %v1073
    %v1080 = vsel %vm172, %v1066, 0
    %1082 = vmatprep.subr.bf16.mxu0 0
    %1083 = vmatpush1.bf16.msra.mxu0 %v1075
    %1084 = vmatprep.subr.bf16.mxu0 0
    %1085 = vmatpush1.bf16.msra.mxu0 %v1076
    %1086 = vmatprep.subr.bf16.mxu0 0
    %1087 = vmatpush1.bf16.msra.mxu0 0
    %1088 = vmatprep.subr.bf16.mxu0 0
    %1089 = vmatpush1.bf16.msra.mxu0 0
    %1090 = vmatprep.subr.bf16.mxu0 0
    %1091 = vmatpush1.bf16.msra.mxu0 0
    %1092 = vmatprep.subr.bf16.mxu0 0
    %1093 = vmatpush1.bf16.msra.mxu0 0
    %1094 = vmatprep.subr.bf16.mxu0 0
    %1095 = vmatpush1.bf16.msra.mxu0 0
    %1096 = vmatprep.subr.bf16.mxu0 0
    %1097 = vmatpush1.bf16.msra.mxu0 0
    %1098 = vmatprep.subr.bf16.mxu0 0
    %1099 = vmatpush1.bf16.msra.mxu0 0
    %1100 = vmatprep.subr.bf16.mxu0 0
    %1101 = vmatpush1.bf16.msra.mxu0 0
    %1102 = vmatprep.subr.bf16.mxu0 0
    %1103 = vmatpush1.bf16.msra.mxu0 0
    %1104 = vmatprep.subr.bf16.mxu0 0
    %1105 = vmatpush1.bf16.msra.mxu0 0
    %1106 = vmatprep.subr.bf16.mxu0 0
    %1107 = vmatpush1.bf16.msra.mxu0 0
    %1108 = vmatprep.subr.bf16.mxu0 0
    %1109 = vmatpush1.bf16.msra.mxu0 0
    %1110 = vmatprep.subr.bf16.mxu0 0
    %1111 = vmatpush1.bf16.msra.mxu0 0
    %1112 = vmatprep.subr.bf16.mxu0 0
    %1113 = vmatpush1.bf16.msra.mxu0 0
    %1114 = vmatprep.mubr.bf16.mxu0 0
    %1115 = vmatmul.mubr.bf16.gmra.mrb[0].mxu0 %v1080
    %v1116 = vpop.f32.mrb[0].mxu0
    %v1117 = vadd.f32 0.0, %v1116
    %v1118 = vpop.f32.mrb[0].mxu0
    %v1119 = vpop.f32.mrb[0].mxu0
    %v1120 = vadd.f32 0.0, %v1119
    %v1121 = vpop.f32.mrb[0].mxu0
    %1122 = vdwg.mxu0
    %v1123 = vlaneseq
    %v1124 = vshrl.u32 %v1123, 7
    %v1125 = vsub.s32 7, %v1124
    %v1126 = vrot.slane %v50, %v1125
    %v1127 = vadd.f32 %v1117, %v1126
    %v1128 = vadd.f32 %v1120, %v1126
    %v1129 = vlaneseq
    %v1130 = vshrl.u32 %v1129, 7
    %v1131 = vsub.s32 0, %v1130
    %v1132 = vrot.slane %v51, %v1131
    %1134 = vrot.lane.b32.xlu0 %v1132, 32
    %v1135 = vpop.permute.xlu0 %1134
    %v1137 = vadd.f32 %v1117, %v1135
    %v1138 = vadd.f32 %v1120, %v1135
    %v1139 = vlaneseq
    %v1140 = vshrl.u32 %v1139, 7
    %v1141 = vsub.s32 1, %v1140
    %v1142 = vrot.slane %v51, %v1141
    %1144 = vrot.lane.b32.xlu0 %v1142, 64
    %v1145 = vpop.permute.xlu0 %1144
    %v1147 = vadd.f32 %v1117, %v1145
    %v1148 = vadd.f32 %v1120, %v1145
    %v1149 = vpack.c.bf16 %v1127, %v1127
    %v1150 = vpack.c.bf16 %v1128, %v1128
    %v1151 = vpack.c.bf16 %v1137, %v1137
    %v1152 = vpack.c.bf16 %v1138, %v1138
    %1154 = vrot.lane.b32.xlu0 %v1151, 96
    %v1155 = vpop.permute.xlu0 %1154
    %v1157 = vsel %vm172, %v1149, 0
    %v1160 = vsel %vm172, %v1155, 0
    %1162 = vmatprep.subr.bf16.mxu0 0
    %1163 = vmatpush1.bf16.xpose.msra.mxu0 %v1160
    %1164 = vmatprep.subr.bf16.mxu0 0
    %1165 = vmatpush1.bf16.xpose.msra.mxu0 0
    %1166 = vmatprep.subr.bf16.mxu0 0
    %1167 = vmatpush1.bf16.xpose.msra.mxu0 0
    %1168 = vmatprep.subr.bf16.mxu0 0
    %1169 = vmatpush1.bf16.xpose.msra.mxu0 0
    %1170 = vmatprep.subr.bf16.mxu0 0
    %1171 = vmatpush1.bf16.xpose.msra.mxu0 0
    %1172 = vmatprep.subr.bf16.mxu0 0
    %1173 = vmatpush1.bf16.xpose.msra.mxu0 0
    %1174 = vmatprep.subr.bf16.mxu0 0
    %1175 = vmatpush1.bf16.xpose.msra.mxu0 0
    %1176 = vmatprep.subr.bf16.mxu0 0
    %1177 = vmatpush1.bf16.xpose.msra.mxu0 0
    %1178 = vmatprep.subr.bf16.mxu0 0
    %1179 = vmatpush1.bf16.xpose.msra.mxu0 0
    %1180 = vmatprep.subr.bf16.mxu0 0
    %1181 = vmatpush1.bf16.xpose.msra.mxu0 0
    %1182 = vmatprep.subr.bf16.mxu0 0
    %1183 = vmatpush1.bf16.xpose.msra.mxu0 0
    %1184 = vmatprep.subr.bf16.mxu0 0
    %1185 = vmatpush1.bf16.xpose.msra.mxu0 0
    %1186 = vmatprep.subr.bf16.mxu0 0
    %1187 = vmatpush1.bf16.xpose.msra.mxu0 0
    %1188 = vmatprep.subr.bf16.mxu0 0
    %1189 = vmatpush1.bf16.xpose.msra.mxu0 0
    %1190 = vmatprep.subr.bf16.mxu0 0
    %1191 = vmatpush1.bf16.xpose.msra.mxu0 0
    %1192 = vmatprep.subr.bf16.mxu0 0
    %1193 = vmatpush1.bf16.xpose.msra.mxu0 0
    %1194 = vmatprep.mubr.bf16.mxu0 0
    %1195 = vmatmul.mubr.bf16.gmra.mrb[0].mxu0 %v1157
    %v1196 = vpop.f32.mrb[0].mxu0
    %v1197 = vadd.f32 0.0, %v1196
    %v1198 = vpop.f32.mrb[0].mxu0
    %v1199 = vpop.f32.mrb[0].mxu0
    %v1200 = vpop.f32.mrb[0].mxu0
    %1201 = vdwg.mxu0
    %1203 = vrot.lane.b32.xlu0 %v1152, 96
    %v1204 = vpop.permute.xlu0 %1203
    %v1206 = vsel %vm172, %v1150, 0
    %v1209 = vsel %vm172, %v1204, 0
    %1211 = vmatprep.subr.bf16.mxu0 0
    %1212 = vmatpush1.bf16.xpose.msra.mxu0 %v1209
    %1213 = vmatprep.subr.bf16.mxu0 0
    %1214 = vmatpush1.bf16.xpose.msra.mxu0 0
    %1215 = vmatprep.subr.bf16.mxu0 0
    %1216 = vmatpush1.bf16.xpose.msra.mxu0 0
    %1217 = vmatprep.subr.bf16.mxu0 0
    %1218 = vmatpush1.bf16.xpose.msra.mxu0 0
    %1219 = vmatprep.subr.bf16.mxu0 0
    %1220 = vmatpush1.bf16.xpose.msra.mxu0 0
    %1221 = vmatprep.subr.bf16.mxu0 0
    %1222 = vmatpush1.bf16.xpose.msra.mxu0 0
    %1223 = vmatprep.subr.bf16.mxu0 0
    %1224 = vmatpush1.bf16.xpose.msra.mxu0 0
    %1225 = vmatprep.subr.bf16.mxu0 0
    %1226 = vmatpush1.bf16.xpose.msra.mxu0 0
    %1227 = vmatprep.subr.bf16.mxu0 0
    %1228 = vmatpush1.bf16.xpose.msra.mxu0 0
    %1229 = vmatprep.subr.bf16.mxu0 0
    %1230 = vmatpush1.bf16.xpose.msra.mxu0 0
    %1231 = vmatprep.subr.bf16.mxu0 0
    %1232 = vmatpush1.bf16.xpose.msra.mxu0 0
    %1233 = vmatprep.subr.bf16.mxu0 0
    %1234 = vmatpush1.bf16.xpose.msra.mxu0 0
    %1235 = vmatprep.subr.bf16.mxu0 0
    %1236 = vmatpush1.bf16.xpose.msra.mxu0 0
    %1237 = vmatprep.subr.bf16.mxu0 0
    %1238 = vmatpush1.bf16.xpose.msra.mxu0 0
    %1239 = vmatprep.subr.bf16.mxu0 0
    %1240 = vmatpush1.bf16.xpose.msra.mxu0 0
    %1241 = vmatprep.subr.bf16.mxu0 0
    %1242 = vmatpush1.bf16.xpose.msra.mxu0 0
    %1243 = vmatprep.mubr.bf16.mxu0 0
    %1244 = vmatmul.mubr.bf16.gmra.mrb[0].mxu0 %v1206
    %v1245 = vpop.f32.mrb[0].mxu0
    %v1246 = vadd.f32 0.0, %v1245
    %v1247 = vpop.f32.mrb[0].mxu0
    %v1248 = vpop.f32.mrb[0].mxu0
    %v1249 = vpop.f32.mrb[0].mxu0
    %1250 = vdwg.mxu0
    %v1251 = vmul.f32 %v1197, 0.17677669
    %v1252 = vmul.f32 %v1246, 0.17677669
    %v1253 = vsel %vm60, %v1251, -inf
    %1254 = vmax.xlane.f32.xlu0 %v1253
    %v1255 = vpop.xlane.xlu0 %1254
    %v1256 = vsel %vm60, %v1252, -inf
    %1257 = vmax.xlane.f32.xlu0 %v1256
    %v1258 = vpop.xlane.xlu0 %1257
    %v1259 = vsub.f32 %v1251, %v1255
    %v1260 = vsub.f32 %v1252, %v1258
    %v1261 = vmul.f32 %v1259, 1.442695
    %v1262 = vpow.pop %v1261
    %v1263 = vmul.f32 %v1260, 1.442695
    %v1264 = vpow.pop %v1263
    %v1265 = vsel %vm60, %v1262, 0.0
    %1266 = vadd.xlane.f32.xlu0 %v1265
    %v1267 = vpop.xlane.xlu0 %1266
    %v1268 = vsel %vm60, %v1264, 0.0
    %1269 = vadd.xlane.f32.xlu0 %v1268
    %v1270 = vpop.xlane.xlu0 %1269
    %v1271 = vrcp.pop %v1267
    %v1272 = vmul.f32 %v1262, %v1271
    %v1273 = vrcp.pop %v1270
    %v1274 = vmul.f32 %v1264, %v1273
    %v1275 = vpack.c.bf16 %v1272, %v1272
    %v1276 = vpack.c.bf16 %v1274, %v1274
    %v1277 = vpack.c.bf16 %v1147, %v1147
    %v1278 = vpack.c.bf16 %v1148, %v1148
    %1280 = vrot.lane.b32.xlu0 %v1277, 64
    %v1281 = vpop.permute.xlu0 %1280
    %v1283 = vsel %vm60, %v1275, 0
    %v1286 = vsel %vm64, %v1281, 0
    %1288 = vmatprep.subr.bf16.mxu0 0
    %1289 = vmatpush1.bf16.msra.mxu0 %v1286
    %1290 = vmatprep.subr.bf16.mxu0 0
    %1291 = vmatpush1.bf16.msra.mxu0 0
    %1292 = vmatprep.subr.bf16.mxu0 0
    %1293 = vmatpush1.bf16.msra.mxu0 0
    %1294 = vmatprep.subr.bf16.mxu0 0
    %1295 = vmatpush1.bf16.msra.mxu0 0
    %1296 = vmatprep.subr.bf16.mxu0 0
    %1297 = vmatpush1.bf16.msra.mxu0 0
    %1298 = vmatprep.subr.bf16.mxu0 0
    %1299 = vmatpush1.bf16.msra.mxu0 0
    %1300 = vmatprep.subr.bf16.mxu0 0
    %1301 = vmatpush1.bf16.msra.mxu0 0
    %1302 = vmatprep.subr.bf16.mxu0 0
    %1303 = vmatpush1.bf16.msra.mxu0 0
    %1304 = vmatprep.subr.bf16.mxu0 0
    %1305 = vmatpush1.bf16.msra.mxu0 0
    %1306 = vmatprep.subr.bf16.mxu0 0
    %1307 = vmatpush1.bf16.msra.mxu0 0
    %1308 = vmatprep.subr.bf16.mxu0 0
    %1309 = vmatpush1.bf16.msra.mxu0 0
    %1310 = vmatprep.subr.bf16.mxu0 0
    %1311 = vmatpush1.bf16.msra.mxu0 0
    %1312 = vmatprep.subr.bf16.mxu0 0
    %1313 = vmatpush1.bf16.msra.mxu0 0
    %1314 = vmatprep.subr.bf16.mxu0 0
    %1315 = vmatpush1.bf16.msra.mxu0 0
    %1316 = vmatprep.subr.bf16.mxu0 0
    %1317 = vmatpush1.bf16.msra.mxu0 0
    %1318 = vmatprep.subr.bf16.mxu0 0
    %1319 = vmatpush1.bf16.msra.mxu0 0
    %1320 = vmatprep.mubr.bf16.mxu0 0
    %1321 = vmatmul.mubr.bf16.gmra.mrb[0].mxu0 %v1283
    %v1322 = vpop.f32.mrb[0].mxu0
    %v1323 = vadd.f32 0.0, %v1322
    %v1324 = vpop.f32.mrb[0].mxu0
    %v1325 = vpop.f32.mrb[0].mxu0
    %v1326 = vpop.f32.mrb[0].mxu0
    %1327 = vdwg.mxu0
    %1329 = vrot.lane.b32.xlu0 %v1278, 64
    %v1330 = vpop.permute.xlu0 %1329
    %v1332 = vsel %vm60, %v1276, 0
    %v1335 = vsel %vm64, %v1330, 0
    %1337 = vmatprep.subr.bf16.mxu0 0
    %1338 = vmatpush1.bf16.msra.mxu0 %v1335
    %1339 = vmatprep.subr.bf16.mxu0 0
    %1340 = vmatpush1.bf16.msra.mxu0 0
    %1341 = vmatprep.subr.bf16.mxu0 0
    %1342 = vmatpush1.bf16.msra.mxu0 0
    %1343 = vmatprep.subr.bf16.mxu0 0
    %1344 = vmatpush1.bf16.msra.mxu0 0
    %1345 = vmatprep.subr.bf16.mxu0 0
    %1346 = vmatpush1.bf16.msra.mxu0 0
    %1347 = vmatprep.subr.bf16.mxu0 0
    %1348 = vmatpush1.bf16.msra.mxu0 0
    %1349 = vmatprep.subr.bf16.mxu0 0
    %1350 = vmatpush1.bf16.msra.mxu0 0
    %1351 = vmatprep.subr.bf16.mxu0 0
    %1352 = vmatpush1.bf16.msra.mxu0 0
    %1353 = vmatprep.subr.bf16.mxu0 0
    %1354 = vmatpush1.bf16.msra.mxu0 0
    %1355 = vmatprep.subr.bf16.mxu0 0
    %1356 = vmatpush1.bf16.msra.mxu0 0
    %1357 = vmatprep.subr.bf16.mxu0 0
    %1358 = vmatpush1.bf16.msra.mxu0 0
    %1359 = vmatprep.subr.bf16.mxu0 0
    %1360 = vmatpush1.bf16.msra.mxu0 0
    %1361 = vmatprep.subr.bf16.mxu0 0
    %1362 = vmatpush1.bf16.msra.mxu0 0
    %1363 = vmatprep.subr.bf16.mxu0 0
    %1364 = vmatpush1.bf16.msra.mxu0 0
    %1365 = vmatprep.subr.bf16.mxu0 0
    %1366 = vmatpush1.bf16.msra.mxu0 0
    %1367 = vmatprep.subr.bf16.mxu0 0
    %1368 = vmatpush1.bf16.msra.mxu0 0
    %1369 = vmatprep.mubr.bf16.mxu0 0
    %1370 = vmatmul.mubr.bf16.gmra.mrb[0].mxu0 %v1332
    %v1371 = vpop.f32.mrb[0].mxu0
    %v1372 = vadd.f32 0.0, %v1371
    %v1373 = vpop.f32.mrb[0].mxu0
    %v1374 = vpop.f32.mrb[0].mxu0
    %v1375 = vpop.f32.mrb[0].mxu0
    %1376 = vdwg.mxu0
    %s1377 = scalar_lea.vmem %s4, 16
    %v1378 = vld [vmem:[%s1377] sm:$0xf]
    %v1379 = vld [vmem:[%s1377 + $0x4] sm:$0xf]
    %v1380 = vld [vmem:[%s1377 + $0x8] sm:$0xf]
    %v1381 = vld [vmem:[%s1377 + $0xc] sm:$0xf]
    %v1382 = vpack.c.bf16 %v1372, %v1323
    %v1383 = vlaneseq
    %v1384 = vshrl.u32 %v1383, 7
    %v1385 = vsub.s32 2, %v1384
    %v1386 = vrot.slane %v51, %v1385
    %v1391 = vunpack.c.l.b16 %v1378
    %v1392 = vunpack.c.l.b16 %v1379
    %v1393 = vunpack.c.l.b16 %v1380
    %v1394 = vunpack.c.l.b16 %v1381
    %v1395 = vpack.c.b16 %v1392, %v1391
    %v1396 = vpack.c.b16 %v1394, %v1393
    %v1400 = vsel %vm172, %v1382, 0
    %1402 = vmatprep.subr.bf16.mxu0 0
    %1403 = vmatpush1.bf16.msra.mxu0 %v1395
    %1404 = vmatprep.subr.bf16.mxu0 0
    %1405 = vmatpush1.bf16.msra.mxu0 %v1396
    %1406 = vmatprep.subr.bf16.mxu0 0
    %1407 = vmatpush1.bf16.msra.mxu0 0
    %1408 = vmatprep.subr.bf16.mxu0 0
    %1409 = vmatpush1.bf16.msra.mxu0 0
    %1410 = vmatprep.subr.bf16.mxu0 0
    %1411 = vmatpush1.bf16.msra.mxu0 0
    %1412 = vmatprep.subr.bf16.mxu0 0
    %1413 = vmatpush1.bf16.msra.mxu0 0
    %1414 = vmatprep.subr.bf16.mxu0 0
    %1415 = vmatpush1.bf16.msra.mxu0 0
    %1416 = vmatprep.subr.bf16.mxu0 0
    %1417 = vmatpush1.bf16.msra.mxu0 0
    %1418 = vmatprep.subr.bf16.mxu0 0
    %1419 = vmatpush1.bf16.msra.mxu0 0
    %1420 = vmatprep.subr.bf16.mxu0 0
    %1421 = vmatpush1.bf16.msra.mxu0 0
    %1422 = vmatprep.subr.bf16.mxu0 0
    %1423 = vmatpush1.bf16.msra.mxu0 0
    %1424 = vmatprep.subr.bf16.mxu0 0
    %1425 = vmatpush1.bf16.msra.mxu0 0
    %1426 = vmatprep.subr.bf16.mxu0 0
    %1427 = vmatpush1.bf16.msra.mxu0 0
    %1428 = vmatprep.subr.bf16.mxu0 0
    %1429 = vmatpush1.bf16.msra.mxu0 0
    %1430 = vmatprep.subr.bf16.mxu0 0
    %1431 = vmatpush1.bf16.msra.mxu0 0
    %1432 = vmatprep.subr.bf16.mxu0 0
    %1433 = vmatpush1.bf16.msra.mxu0 0
    %1434 = vmatprep.mubr.bf16.mxu0 0
    %1435 = vmatmul.mubr.bf16.gmra.mrb[0].mxu0 %v1400
    %v1436 = vpop.f32.mrb[0].mxu0
    %v1437 = vadd.f32 %v1386, %v1436
    %v1438 = vpop.f32.mrb[0].mxu0
    %v1439 = vpop.f32.mrb[0].mxu0
    %v1440 = vadd.f32 %v1386, %v1439
    %v1441 = vpop.f32.mrb[0].mxu0
    %1442 = vdwg.mxu0
    %v1443 = vadd.f32 %v1059, %v1437
    %v1444 = vadd.f32 %v1060, %v1440
    %v1445 = vsel %vm172, %v1443, 0.0
    %1446 = vadd.xlane.f32.xlu0 %v1445
    %v1447 = vpop.xlane.xlu0 %1446
    %v1448 = vsel %vm172, %v1444, 0.0
    %1449 = vadd.xlane.f32.xlu0 %v1448
    %v1450 = vpop.xlane.xlu0 %1449
    %v1451 = vmul.f32 %v1447, %v607
    %v1452 = vmul.f32 %v1450, %v607
    %v1453 = vsub.f32 %v1443, %v1451
    %v1454 = vsub.f32 %v1444, %v1452
    %v1455 = vmul.f32 %v1453, %v1453
    %v1456 = vmul.f32 %v1454, %v1454
    %v1457 = vsel %vm172, %v1455, 0.0
    %1458 = vadd.xlane.f32.xlu0 %v1457
    %v1459 = vpop.xlane.xlu0 %1458
    %v1460 = vsel %vm172, %v1456, 0.0
    %1461 = vadd.xlane.f32.xlu0 %v1460
    %v1462 = vpop.xlane.xlu0 %1461
    %v1463 = vmul.f32 %v1459, %v607
    %v1464 = vmul.f32 %v1462, %v607
    %v1465 = vadd.f32 %v1463, 1e-05
    %v1466 = vadd.f32 %v1464, 1e-05
    %v1467 = vrsqrt.pop %v1465
    %v1468 = vrsqrt.pop %v1466
    %v1469 = vmul.f32 %v1453, %v1467
    %v1470 = vmul.f32 %v1454, %v1468
    %v1471 = vlaneseq
    %v1472 = vshrl.u32 %v1471, 7
    %v1473 = vsub.s32 4, %v1472
    %v1474 = vrot.slane %v51, %v1473
    %v1475 = vmul.f32 %v1469, %v1474
    %v1476 = vmul.f32 %v1470, %v1474
    %v1477 = vlaneseq
    %v1478 = vshrl.u32 %v1477, 7
    %v1479 = vsub.s32 5, %v1478
    %v1480 = vrot.slane %v51, %v1479
    %v1481 = vadd.f32 %v1475, %v1480
    %v1482 = vadd.f32 %v1476, %v1480
    %s1483 = scalar_lea.vmem %s5, 16
    %v1484 = vld [vmem:[%s1483] sm:$0xf]
    %v1485 = vld [vmem:[%s1483 + $0x4] sm:$0xf]
    %v1486 = vld [vmem:[%s1483 + $0x8] sm:$0xf]
    %v1487 = vld [vmem:[%s1483 + $0xc] sm:$0xf]
    %v1488 = vpack.c.bf16 %v1482, %v1481
    %v1489 = vlaneseq
    %v1490 = vshrl.u32 %v1489, 7
    %v1491 = vsub.s32 1, %v1490
    %v1492 = vrot.slane %v53, %v1491
    %v1497 = vunpack.c.l.b16 %v1484
    %v1498 = vunpack.c.l.b16 %v1485
    %v1499 = vunpack.c.l.b16 %v1486
    %v1500 = vunpack.c.l.b16 %v1487
    %v1501 = vpack.c.b16 %v1498, %v1497
    %v1502 = vpack.c.b16 %v1500, %v1499
    %v1506 = vsel %vm172, %v1488, 0
    %1508 = vmatprep.subr.bf16.mxu0 0
    %1509 = vmatpush1.bf16.msra.mxu0 %v1501
    %1510 = vmatprep.subr.bf16.mxu0 0
    %1511 = vmatpush1.bf16.msra.mxu0 %v1502
    %1512 = vmatprep.subr.bf16.mxu0 0
    %1513 = vmatpush1.bf16.msra.mxu0 0
    %1514 = vmatprep.subr.bf16.mxu0 0
    %1515 = vmatpush1.bf16.msra.mxu0 0
    %1516 = vmatprep.subr.bf16.mxu0 0
    %1517 = vmatpush1.bf16.msra.mxu0 0
    %1518 = vmatprep.subr.bf16.mxu0 0
    %1519 = vmatpush1.bf16.msra.mxu0 0
    %1520 = vmatprep.subr.bf16.mxu0 0
    %1521 = vmatpush1.bf16.msra.mxu0 0
    %1522 = vmatprep.subr.bf16.mxu0 0
    %1523 = vmatpush1.bf16.msra.mxu0 0
    %1524 = vmatprep.subr.bf16.mxu0 0
    %1525 = vmatpush1.bf16.msra.mxu0 0
    %1526 = vmatprep.subr.bf16.mxu0 0
    %1527 = vmatpush1.bf16.msra.mxu0 0
    %1528 = vmatprep.subr.bf16.mxu0 0
    %1529 = vmatpush1.bf16.msra.mxu0 0
    %1530 = vmatprep.subr.bf16.mxu0 0
    %1531 = vmatpush1.bf16.msra.mxu0 0
    %1532 = vmatprep.subr.bf16.mxu0 0
    %1533 = vmatpush1.bf16.msra.mxu0 0
    %1534 = vmatprep.subr.bf16.mxu0 0
    %1535 = vmatpush1.bf16.msra.mxu0 0
    %1536 = vmatprep.subr.bf16.mxu0 0
    %1537 = vmatpush1.bf16.msra.mxu0 0
    %1538 = vmatprep.subr.bf16.mxu0 0
    %1539 = vmatpush1.bf16.msra.mxu0 0
    %1540 = vmatprep.mubr.bf16.mxu0 0
    %1541 = vmatmul.mubr.bf16.gmra.mrb[0].mxu0 %v1506
    %v1542 = vpop.f32.mrb[0].mxu0
    %v1543 = vadd.f32 %v1492, %v1542
    %v1544 = vpop.f32.mrb[0].mxu0
    %v1545 = vpop.f32.mrb[0].mxu0
    %v1546 = vadd.f32 %v1492, %v1545
    %v1547 = vpop.f32.mrb[0].mxu0
    %1548 = vdwg.mxu0
    %v1549 = vmax.f32 %v1543, 0.0
    %v1550 = vmax.f32 %v1546, 0.0
    %s1551 = scalar_lea.vmem %s6, 16
    %v1552 = vld [vmem:[%s1551] sm:$0xf]
    %v1553 = vld [vmem:[%s1551 + $0x4] sm:$0xf]
    %v1554 = vld [vmem:[%s1551 + $0x8] sm:$0xf]
    %v1555 = vld [vmem:[%s1551 + $0xc] sm:$0xf]
    %v1556 = vpack.c.bf16 %v1550, %v1549
    %v1557 = vlaneseq
    %v1558 = vshrl.u32 %v1557, 7
    %v1559 = vsub.s32 3, %v1558
    %v1560 = vrot.slane %v51, %v1559
    %v1565 = vunpack.c.l.b16 %v1552
    %v1566 = vunpack.c.l.b16 %v1553
    %v1567 = vunpack.c.l.b16 %v1554
    %v1568 = vunpack.c.l.b16 %v1555
    %v1569 = vpack.c.b16 %v1566, %v1565
    %v1570 = vpack.c.b16 %v1568, %v1567
    %v1574 = vsel %vm172, %v1556, 0
    %1576 = vmatprep.subr.bf16.mxu0 0
    %1577 = vmatpush1.bf16.msra.mxu0 %v1569
    %1578 = vmatprep.subr.bf16.mxu0 0
    %1579 = vmatpush1.bf16.msra.mxu0 %v1570
    %1580 = vmatprep.subr.bf16.mxu0 0
    %1581 = vmatpush1.bf16.msra.mxu0 0
    %1582 = vmatprep.subr.bf16.mxu0 0
    %1583 = vmatpush1.bf16.msra.mxu0 0
    %1584 = vmatprep.subr.bf16.mxu0 0
    %1585 = vmatpush1.bf16.msra.mxu0 0
    %1586 = vmatprep.subr.bf16.mxu0 0
    %1587 = vmatpush1.bf16.msra.mxu0 0
    %1588 = vmatprep.subr.bf16.mxu0 0
    %1589 = vmatpush1.bf16.msra.mxu0 0
    %1590 = vmatprep.subr.bf16.mxu0 0
    %1591 = vmatpush1.bf16.msra.mxu0 0
    %1592 = vmatprep.subr.bf16.mxu0 0
    %1593 = vmatpush1.bf16.msra.mxu0 0
    %1594 = vmatprep.subr.bf16.mxu0 0
    %1595 = vmatpush1.bf16.msra.mxu0 0
    %1596 = vmatprep.subr.bf16.mxu0 0
    %1597 = vmatpush1.bf16.msra.mxu0 0
    %1598 = vmatprep.subr.bf16.mxu0 0
    %1599 = vmatpush1.bf16.msra.mxu0 0
    %1600 = vmatprep.subr.bf16.mxu0 0
    %1601 = vmatpush1.bf16.msra.mxu0 0
    %1602 = vmatprep.subr.bf16.mxu0 0
    %1603 = vmatpush1.bf16.msra.mxu0 0
    %1604 = vmatprep.subr.bf16.mxu0 0
    %1605 = vmatpush1.bf16.msra.mxu0 0
    %1606 = vmatprep.subr.bf16.mxu0 0
    %1607 = vmatpush1.bf16.msra.mxu0 0
    %1608 = vmatprep.mubr.bf16.mxu0 0
    %1609 = vmatmul.mubr.bf16.gmra.mrb[0].mxu0 %v1574
    %v1610 = vpop.f32.mrb[0].mxu0
    %v1611 = vadd.f32 %v1560, %v1610
    %v1612 = vpop.f32.mrb[0].mxu0
    %v1613 = vpop.f32.mrb[0].mxu0
    %v1614 = vadd.f32 %v1560, %v1613
    %v1615 = vpop.f32.mrb[0].mxu0
    %1616 = vdwg.mxu0
    %v1617 = vadd.f32 %v1481, %v1611
    %v1618 = vadd.f32 %v1482, %v1614
    %v1619 = vsel %vm172, %v1617, 0.0
    %1620 = vadd.xlane.f32.xlu0 %v1619
    %v1621 = vpop.xlane.xlu0 %1620
    %v1622 = vsel %vm172, %v1618, 0.0
    %1623 = vadd.xlane.f32.xlu0 %v1622
    %v1624 = vpop.xlane.xlu0 %1623
    %v1625 = vmul.f32 %v1621, %v607
    %v1626 = vmul.f32 %v1624, %v607
    %v1627 = vsub.f32 %v1617, %v1625
    %v1628 = vsub.f32 %v1618, %v1626
    %v1629 = vmul.f32 %v1627, %v1627
    %v1630 = vmul.f32 %v1628, %v1628
    %v1631 = vsel %vm172, %v1629, 0.0
    %1632 = vadd.xlane.f32.xlu0 %v1631
    %v1633 = vpop.xlane.xlu0 %1632
    %v1634 = vsel %vm172, %v1630, 0.0
    %1635 = vadd.xlane.f32.xlu0 %v1634
    %v1636 = vpop.xlane.xlu0 %1635
    %v1637 = vmul.f32 %v1633, %v607
    %v1638 = vmul.f32 %v1636, %v607
    %v1639 = vadd.f32 %v1637, 1e-05
    %v1640 = vadd.f32 %v1638, 1e-05
    %v1641 = vrsqrt.pop %v1639
    %v1642 = vrsqrt.pop %v1640
    %v1643 = vmul.f32 %v1627, %v1641
    %v1644 = vmul.f32 %v1628, %v1642
    %v1645 = vlaneseq
    %v1646 = vshrl.u32 %v1645, 7
    %v1647 = vsub.s32 6, %v1646
    %v1648 = vrot.slane %v51, %v1647
    %v1649 = vmul.f32 %v1643, %v1648
    %v1650 = vmul.f32 %v1644, %v1648
    %v1651 = vlaneseq
    %v1652 = vshrl.u32 %v1651, 7
    %v1653 = vsub.s32 7, %v1652
    %v1654 = vrot.slane %v51, %v1653
    %v1655 = vadd.f32 %v1649, %v1654
    %v1656 = vadd.f32 %v1650, %v1654
    %v1657 = vadd.f32 %v1655, %v877
    %v1658 = vadd.f32 %v1656, %v878
    %v1659 = vadd.f32 %v52, 1e-05
    %v1660 = vrsqrt.pop %v1659
    %v1662 = vrot.slane %v1660, 3
    %v1664 = vmul.f32 %v52, %v1662
    %v1665 = vlaneseq
    %v1666 = vshrl.u32 %v1665, 7
    %v1667 = vsub.s32 2, %v1666
    %v1668 = vrot.slane %v52, %v1667
    %v1669 = vsub.f32 %v1657, %v1668
    %v1670 = vsub.f32 %v1658, %v1668
    %v1671 = vlaneseq
    %v1672 = vshrl.u32 %v1671, 7
    %v1673 = vsub.s32 0, %v1672
    %v1674 = vrot.slane %v1664, %v1673
    %v1675 = vmul.f32 %v1669, %v1674
    %v1676 = vmul.f32 %v1670, %v1674
    %v1677 = vlaneseq
    %v1678 = vshrl.u32 %v1677, 7
    %v1679 = vsub.s32 1, %v1678
    %v1680 = vrot.slane %v52, %v1679
    %v1681 = vadd.f32 %v1675, %v1680
    %v1682 = vadd.f32 %v1676, %v1680
    %v1683 = vmax.f32 %v1681, 0.0
    %v1684 = vmax.f32 %v1682, 0.0
    %v1688 = vunpack.c.l.s4 1983009808
    %v1689 = vunpack.c.0.s8 %v1688
    %v1690 = vlaneseq
    %v1691 = vshrl.u32 %v1690, 7
    %v1692 = vsub.s32 %v1689, %v1691
    %v1693 = vrot.slane %v1683, %v1692
    %v1695 = vunpack.c.l.s4 1983009808
    %v1696 = vunpack.c.0.s8 %v1695
    %v1697 = vlaneseq
    %v1698 = vshrl.u32 %v1697, 7
    %v1699 = vsub.s32 %v1696, %v1698
    %v1700 = vrot.slane %v1684, %v1699
    %vm1701 = vcmask 1044484
    %v1702 = vsel %vm1701, %v1693, %v1693
    %vm1703 = vcmask 1046534
    %v1704 = vsel %vm1703, %v1693, %v1702
    %v1705 = vrot.slane %v1700, 7
    %vm1706 = vcmask 1041409
    %v1707 = vsel %vm1706, %v1705, %v1704
    %vm1708 = vcmask 1043459
    %v1709 = vsel %vm1708, %v1705, %v1707
    %vm1710 = vcmask 1045509
    %v1711 = vsel %vm1710, %v1705, %v1709
    %vm1712 = vcmask 1047559
    %v1713 = vsel %vm1712, %v1705, %v1711
    %vm1715 = vcmask 254976
    %1716 = vst.msk [vmem:[#allocation2] sm:$0x3] %vm1715, %v1713
    %v1717 = vrot.slane %v1693, 1
    %v1718 = vsel %vm1701, %v1717, %v1717
    %v1719 = vsel %vm1703, %v1717, %v1718
    %v1720 = vsel %vm1706, %v1700, %v1719
    %v1721 = vsel %vm1708, %v1700, %v1720
    %v1722 = vsel %vm1710, %v1700, %v1721
    %v1723 = vsel %vm1712, %v1700, %v1722
    %1724 = vrot.lane.b32.xlu0 %v1723, 32
    %v1725 = vpop.permute.xlu0 %1724
    %vm1727 = vcmask 517376
    %1728 = vst.msk [vmem:[#allocation2] sm:$0x3] %vm1727, %v1725
    %v1729 = vcombine.high %v1693, %v1693
    %v1730 = vcombine.high %v1700, %v1700
    %v1731 = vsel %vm1701, %v1729, %v1729
    %v1732 = vsel %vm1703, %v1729, %v1731
    %v1733 = vrot.slane %v1730, 7
    %v1734 = vsel %vm1706, %v1733, %v1732
    %v1735 = vsel %vm1708, %v1733, %v1734
    %v1736 = vsel %vm1710, %v1733, %v1735
    %v1737 = vsel %vm1712, %v1733, %v1736
    %1738 = vrot.lane.b32.xlu0 %v1737, 64
    %v1739 = vpop.permute.xlu0 %1738
    %vm1741 = vcmask 779776
    %1742 = vst.msk [vmem:[#allocation2] sm:$0x3] %vm1741, %v1739
    %v1743 = vrot.slane %v1729, 1
    %v1744 = vsel %vm1701, %v1743, %v1743
    %v1745 = vsel %vm1703, %v1743, %v1744
    %v1746 = vsel %vm1706, %v1730, %v1745
    %v1747 = vsel %vm1708, %v1730, %v1746
    %v1748 = vsel %vm1710, %v1730, %v1747
    %v1749 = vsel %vm1712, %v1730, %v1748
    %1750 = vrot.lane.b32.xlu0 %v1749, 96
    %v1751 = vpop.permute.xlu0 %1750
    %vm1753 = vcmask 1042176
    %1754 = vst.msk [vmem:[#allocation2] sm:$0x3] %vm1753, %v1751
    %v1755 = vcombine.high %v1683, %v1683
    %v1757 = vunpack.c.l.s4 1983009808
    %v1758 = vunpack.c.0.s8 %v1757
    %v1759 = vlaneseq
    %v1760 = vshrl.u32 %v1759, 7
    %v1761 = vsub.s32 %v1758, %v1760
    %v1762 = vrot.slane %v1755, %v1761
    %v1763 = vcombine.high %v1684, %v1684
    %v1765 = vunpack.c.l.s4 1983009808
    %v1766 = vunpack.c.0.s8 %v1765
    %v1767 = vlaneseq
    %v1768 = vshrl.u32 %v1767, 7
    %v1769 = vsub.s32 %v1766, %v1768
    %v1770 = vrot.slane %v1763, %v1769
    %v1771 = vsel %vm1701, %v1762, %v1762
    %v1772 = vsel %vm1703, %v1762, %v1771
    %v1773 = vrot.slane %v1770, 7
    %v1774 = vsel %vm1706, %v1773, %v1772
    %v1775 = vsel %vm1708, %v1773, %v1774
    %v1776 = vsel %vm1710, %v1773, %v1775
    %v1777 = vsel %vm1712, %v1773, %v1776
    %1779 = vst.msk [vmem:[#allocation2 + $0x2] sm:$0x3] %vm1715, %v1777
    %v1780 = vrot.slane %v1762, 1
    %v1781 = vsel %vm1701, %v1780, %v1780
    %v1782 = vsel %vm1703, %v1780, %v1781
    %v1783 = vsel %vm1706, %v1770, %v1782
    %v1784 = vsel %vm1708, %v1770, %v1783
    %v1785 = vsel %vm1710, %v1770, %v1784
    %v1786 = vsel %vm1712, %v1770, %v1785
    %1787 = vrot.lane.b32.xlu0 %v1786, 32
    %v1788 = vpop.permute.xlu0 %1787
    %1790 = vst.msk [vmem:[#allocation2 + $0x2] sm:$0x3] %vm1727, %v1788
    %v1791 = vcombine.high %v1762, %v1762
    %v1792 = vcombine.high %v1770, %v1770
    %v1793 = vsel %vm1701, %v1791, %v1791
    %v1794 = vsel %vm1703, %v1791, %v1793
    %v1795 = vrot.slane %v1792, 7
    %v1796 = vsel %vm1706, %v1795, %v1794
    %v1797 = vsel %vm1708, %v1795, %v1796
    %v1798 = vsel %vm1710, %v1795, %v1797
    %v1799 = vsel %vm1712, %v1795, %v1798
    %1800 = vrot.lane.b32.xlu0 %v1799, 64
    %v1801 = vpop.permute.xlu0 %1800
    %1803 = vst.msk [vmem:[#allocation2 + $0x2] sm:$0x3] %vm1741, %v1801
    %v1804 = vrot.slane %v1791, 1
    %v1805 = vsel %vm1701, %v1804, %v1804
    %v1806 = vsel %vm1703, %v1804, %v1805
    %v1807 = vsel %vm1706, %v1792, %v1806
    %v1808 = vsel %vm1708, %v1792, %v1807
    %v1809 = vsel %vm1710, %v1792, %v1808
    %v1810 = vsel %vm1712, %v1792, %v1809
    %1811 = vrot.lane.b32.xlu0 %v1810, 96
    %v1812 = vpop.permute.xlu0 %1811
    %1814 = vst.msk [vmem:[#allocation2 + $0x2] sm:$0x3] %vm1753, %v1812
    %v1815 = vld [vmem:[#allocation2] sm:$0xf]
    %v1816 = vld [vmem:[%s13] sm:$0x7]
    %v1817 = vld [vmem:[%s10] sm:$0xf]
    %v1818 = vld [vmem:[%s10 + $0x4] sm:$0xf]
    %v1819 = vld [vmem:[%s10 + $0x8] sm:$0xf]
    %v1820 = vld [vmem:[%s10 + $0xc] sm:$0xf]
    %v1821 = vld [vmem:[%s10 + $0x10] sm:$0xf]
    %v1822 = vld [vmem:[%s10 + $0x14] sm:$0xf]
    %v1823 = vld [vmem:[%s10 + $0x18] sm:$0xf]
    %v1824 = vld [vmem:[%s10 + $0x1c] sm:$0xf]
    %v1825 = vld [vmem:[%s10 + $0x20] sm:$0xf]
    %v1826 = vld [vmem:[%s10 + $0x24] sm:$0xf]
    %v1827 = vld [vmem:[%s10 + $0x28] sm:$0xf]
    %v1828 = vld [vmem:[%s10 + $0x2c] sm:$0xf]
    %v1829 = vld [vmem:[%s10 + $0x30] sm:$0xf]
    %v1830 = vld [vmem:[%s10 + $0x34] sm:$0xf]
    %v1831 = vld [vmem:[%s10 + $0x38] sm:$0xf]
    %v1832 = vld [vmem:[%s10 + $0x3c] sm:$0xf]
    %v1833 = vld [vmem:[%s10 + $0x40] sm:$0xf]
    %v1834 = vld [vmem:[%s10 + $0x44] sm:$0xf]
    %v1835 = vld [vmem:[%s10 + $0x48] sm:$0xf]
    %v1836 = vld [vmem:[%s10 + $0x4c] sm:$0xf]
    %v1837 = vld [vmem:[%s10 + $0x50] sm:$0xf]
    %v1838 = vld [vmem:[%s10 + $0x54] sm:$0xf]
    %v1839 = vld [vmem:[%s10 + $0x58] sm:$0xf]
    %v1840 = vld [vmem:[%s10 + $0x5c] sm:$0xf]
    %v1841 = vld [vmem:[%s10 + $0x60] sm:$0xf]
    %v1842 = vld [vmem:[%s10 + $0x64] sm:$0xf]
    %v1843 = vld [vmem:[%s10 + $0x68] sm:$0xf]
    %v1844 = vld [vmem:[%s10 + $0x6c] sm:$0xf]
    %v1845 = vld [vmem:[%s10 + $0x70] sm:$0xf]
    %v1846 = vld [vmem:[%s10 + $0x74] sm:$0xf]
    %v1847 = vld [vmem:[%s10 + $0x78] sm:$0xf]
    %v1848 = vld [vmem:[%s10 + $0x7c] sm:$0xf]
    %v1851 = vunpack.c.l.s4 1983009808
    %v1852 = vunpack.c.0.s8 %v1851
    %v1853 = vlaneseq
    %v1854 = vshrl.u32 %v1853, 7
    %v1855 = vsub.s32 %v1852, %v1854
    %v1856 = vrot.slane %v1815, %v1855
    %v1857 = vcombine.high %v1856, %v1856
    %v1860 = vpack.c.bf16 %v1856, %v1856
    %v1861 = vpack.c.bf16 %v1857, %v1857
    %v1862 = vlaneseq
    %v1863 = vshrl.u32 %v1862, 7
    %v1864 = vsub.s32 0, %v1863
    %v1865 = vrot.slane %v1816, %v1864
    %v1898 = vunpack.c.l.b16 %v1817
    %v1899 = vunpack.c.l.b16 %v1818
    %v1900 = vunpack.c.l.b16 %v1819
    %v1901 = vunpack.c.l.b16 %v1820
    %v1902 = vunpack.c.l.b16 %v1821
    %v1903 = vunpack.c.l.b16 %v1822
    %v1904 = vunpack.c.l.b16 %v1823
    %v1905 = vunpack.c.l.b16 %v1824
    %v1906 = vunpack.c.l.b16 %v1825
    %v1907 = vunpack.c.l.b16 %v1826
    %v1908 = vunpack.c.l.b16 %v1827
    %v1909 = vunpack.c.l.b16 %v1828
    %v1910 = vunpack.c.l.b16 %v1829
    %v1911 = vunpack.c.l.b16 %v1830
    %v1912 = vunpack.c.l.b16 %v1831
    %v1913 = vunpack.c.l.b16 %v1832
    %v1914 = vunpack.c.l.b16 %v1833
    %v1915 = vunpack.c.l.b16 %v1834
    %v1916 = vunpack.c.l.b16 %v1835
    %v1917 = vunpack.c.l.b16 %v1836
    %v1918 = vunpack.c.l.b16 %v1837
    %v1919 = vunpack.c.l.b16 %v1838
    %v1920 = vunpack.c.l.b16 %v1839
    %v1921 = vunpack.c.l.b16 %v1840
    %v1922 = vunpack.c.l.b16 %v1841
    %v1923 = vunpack.c.l.b16 %v1842
    %v1924 = vunpack.c.l.b16 %v1843
    %v1925 = vunpack.c.l.b16 %v1844
    %v1926 = vunpack.c.l.b16 %v1845
    %v1927 = vunpack.c.l.b16 %v1846
    %v1928 = vunpack.c.l.b16 %v1847
    %v1929 = vunpack.c.l.b16 %v1848
    %v1930 = vpack.c.b16 %v1899, %v1898
    %v1931 = vpack.c.b16 %v1901, %v1900
    %v1932 = vpack.c.b16 %v1903, %v1902
    %v1933 = vpack.c.b16 %v1905, %v1904
    %v1934 = vpack.c.b16 %v1907, %v1906
    %v1935 = vpack.c.b16 %v1909, %v1908
    %v1936 = vpack.c.b16 %v1911, %v1910
    %v1937 = vpack.c.b16 %v1913, %v1912
    %v1938 = vpack.c.b16 %v1915, %v1914
    %v1939 = vpack.c.b16 %v1917, %v1916
    %v1940 = vpack.c.b16 %v1919, %v1918
    %v1941 = vpack.c.b16 %v1921, %v1920
    %v1942 = vpack.c.b16 %v1923, %v1922
    %v1943 = vpack.c.b16 %v1925, %v1924
    %v1944 = vpack.c.b16 %v1927, %v1926
    %v1945 = vpack.c.b16 %v1929, %v1928
    %1962 = vmatprep.subr.bf16.mxu0 0
    %1963 = vmatpush1.bf16.msra.mxu0 %v1930
    %1964 = vmatprep.subr.bf16.mxu0 0
    %1965 = vmatpush1.bf16.msra.mxu0 %v1931
    %1966 = vmatprep.subr.bf16.mxu0 0
    %1967 = vmatpush1.bf16.msra.mxu0 %v1932
    %1968 = vmatprep.subr.bf16.mxu0 0
    %1969 = vmatpush1.bf16.msra.mxu0 %v1933
    %1970 = vmatprep.subr.bf16.mxu0 0
    %1971 = vmatpush1.bf16.msra.mxu0 %v1934
    %1972 = vmatprep.subr.bf16.mxu0 0
    %1973 = vmatpush1.bf16.msra.mxu0 %v1935
    %1974 = vmatprep.subr.bf16.mxu0 0
    %1975 = vmatpush1.bf16.msra.mxu0 %v1936
    %1976 = vmatprep.subr.bf16.mxu0 0
    %1977 = vmatpush1.bf16.msra.mxu0 %v1937
    %1978 = vmatprep.subr.bf16.mxu0 0
    %1979 = vmatpush1.bf16.msra.mxu0 %v1938
    %1980 = vmatprep.subr.bf16.mxu0 0
    %1981 = vmatpush1.bf16.msra.mxu0 %v1939
    %1982 = vmatprep.subr.bf16.mxu0 0
    %1983 = vmatpush1.bf16.msra.mxu0 %v1940
    %1984 = vmatprep.subr.bf16.mxu0 0
    %1985 = vmatpush1.bf16.msra.mxu0 %v1941
    %1986 = vmatprep.subr.bf16.mxu0 0
    %1987 = vmatpush1.bf16.msra.mxu0 %v1942
    %1988 = vmatprep.subr.bf16.mxu0 0
    %1989 = vmatpush1.bf16.msra.mxu0 %v1943
    %1990 = vmatprep.subr.bf16.mxu0 0
    %1991 = vmatpush1.bf16.msra.mxu0 %v1944
    %1992 = vmatprep.subr.bf16.mxu0 0
    %1993 = vmatpush1.bf16.msra.mxu0 %v1945
    %1994 = vmatprep.mubr.bf16.mxu0 %v1861
    %1995 = vmatmul.mubr.bf16.gmra.mrb[0].mxu0 %v1860
    %v1996 = vpop.f32.mrb[0].mxu0
    %v1997 = vadd.f32 %v1865, %v1996
    %v1998 = vpop.f32.mrb[0].mxu0
    %v1999 = vpop.f32.mrb[0].mxu0
    %v2000 = vpop.f32.mrb[0].mxu0
    %2001 = vdwg.mxu0
    %v2002 = vmax.f32 %v1997, 0.0
    %v2003 = vld [vmem:[%s11] sm:$0xf]
    %v2004 = vld [vmem:[%s11 + $0x4] sm:$0xf]
    %v2005 = vld [vmem:[%s11 + $0x8] sm:$0xf]
    %v2006 = vld [vmem:[%s11 + $0xc] sm:$0xf]
    %v2007 = vld [vmem:[%s11 + $0x10] sm:$0xf]
    %v2008 = vld [vmem:[%s11 + $0x14] sm:$0xf]
    %v2009 = vld [vmem:[%s11 + $0x18] sm:$0xf]
    %v2010 = vld [vmem:[%s11 + $0x1c] sm:$0xf]
    %v2011 = vld [vmem:[%s11 + $0x20] sm:$0xf]
    %v2012 = vld [vmem:[%s11 + $0x24] sm:$0xf]
    %v2013 = vld [vmem:[%s11 + $0x28] sm:$0xf]
    %v2014 = vld [vmem:[%s11 + $0x2c] sm:$0xf]
    %v2015 = vld [vmem:[%s11 + $0x30] sm:$0xf]
    %v2016 = vld [vmem:[%s11 + $0x34] sm:$0xf]
    %v2017 = vld [vmem:[%s11 + $0x38] sm:$0xf]
    %v2018 = vld [vmem:[%s11 + $0x3c] sm:$0xf]
    %v2019 = vpack.c.bf16 %v2002, %v2002
    %v2020 = vlaneseq
    %v2021 = vshrl.u32 %v2020, 7
    %v2022 = vsub.s32 1, %v2021
    %v2023 = vrot.slane %v1816, %v2022
    %v2040 = vunpack.c.l.b16 %v2003
    %v2041 = vunpack.c.l.b16 %v2004
    %v2042 = vunpack.c.l.b16 %v2005
    %v2043 = vunpack.c.l.b16 %v2006
    %v2044 = vunpack.c.l.b16 %v2007
    %v2045 = vunpack.c.l.b16 %v2008
    %v2046 = vunpack.c.l.b16 %v2009
    %v2047 = vunpack.c.l.b16 %v2010
    %v2048 = vunpack.c.l.b16 %v2011
    %v2049 = vunpack.c.l.b16 %v2012
    %v2050 = vunpack.c.l.b16 %v2013
    %v2051 = vunpack.c.l.b16 %v2014
    %v2052 = vunpack.c.l.b16 %v2015
    %v2053 = vunpack.c.l.b16 %v2016
    %v2054 = vunpack.c.l.b16 %v2017
    %v2055 = vunpack.c.l.b16 %v2018
    %v2056 = vpack.c.b16 %v2041, %v2040
    %v2057 = vpack.c.b16 %v2043, %v2042
    %v2058 = vpack.c.b16 %v2045, %v2044
    %v2059 = vpack.c.b16 %v2047, %v2046
    %v2060 = vpack.c.b16 %v2049, %v2048
    %v2061 = vpack.c.b16 %v2051, %v2050
    %v2062 = vpack.c.b16 %v2053, %v2052
    %v2063 = vpack.c.b16 %v2055, %v2054
    %2072 = vmatprep.subr.bf16.mxu0 0
    %2073 = vmatpush1.bf16.msra.mxu0 %v2056
    %2074 = vmatprep.subr.bf16.mxu0 0
    %2075 = vmatpush1.bf16.msra.mxu0 %v2057
    %2076 = vmatprep.subr.bf16.mxu0 0
    %2077 = vmatpush1.bf16.msra.mxu0 %v2058
    %2078 = vmatprep.subr.bf16.mxu0 0
    %2079 = vmatpush1.bf16.msra.mxu0 %v2059
    %2080 = vmatprep.subr.bf16.mxu0 0
    %2081 = vmatpush1.bf16.msra.mxu0 %v2060
    %2082 = vmatprep.subr.bf16.mxu0 0
    %2083 = vmatpush1.bf16.msra.mxu0 %v2061
    %2084 = vmatprep.subr.bf16.mxu0 0
    %2085 = vmatpush1.bf16.msra.mxu0 %v2062
    %2086 = vmatprep.subr.bf16.mxu0 0
    %2087 = vmatpush1.bf16.msra.mxu0 %v2063
    %2088 = vmatprep.subr.bf16.mxu0 0
    %2089 = vmatpush1.bf16.msra.mxu0 0
    %2090 = vmatprep.subr.bf16.mxu0 0
    %2091 = vmatpush1.bf16.msra.mxu0 0
    %2092 = vmatprep.subr.bf16.mxu0 0
    %2093 = vmatpush1.bf16.msra.mxu0 0
    %2094 = vmatprep.subr.bf16.mxu0 0
    %2095 = vmatpush1.bf16.msra.mxu0 0
    %2096 = vmatprep.subr.bf16.mxu0 0
    %2097 = vmatpush1.bf16.msra.mxu0 0
    %2098 = vmatprep.subr.bf16.mxu0 0
    %2099 = vmatpush1.bf16.msra.mxu0 0
    %2100 = vmatprep.subr.bf16.mxu0 0
    %2101 = vmatpush1.bf16.msra.mxu0 0
    %2102 = vmatprep.subr.bf16.mxu0 0
    %2103 = vmatpush1.bf16.msra.mxu0 0
    %2104 = vmatprep.mubr.bf16.mxu0 0
    %2105 = vmatmul.mubr.bf16.gmra.mrb[0].mxu0 %v2019
    %v2106 = vpop.f32.mrb[0].mxu0
    %v2107 = vadd.f32 %v2023, %v2106
    %v2108 = vpop.f32.mrb[0].mxu0
    %v2109 = vpop.f32.mrb[0].mxu0
    %v2110 = vpop.f32.mrb[0].mxu0
    %2111 = vdwg.mxu0
    %v2112 = vmax.f32 %v2107, 0.0
    %v2113 = vld [vmem:[%s12] sm:$0xf]
    %v2114 = vld [vmem:[%s12 + $0x4] sm:$0xf]
    %v2115 = vld [vmem:[%s12 + $0x8] sm:$0xf]
    %v2116 = vld [vmem:[%s12 + $0xc] sm:$0xf]
    %v2117 = vld [vmem:[%s12 + $0x10] sm:$0xf]
    %v2118 = vld [vmem:[%s12 + $0x14] sm:$0xf]
    %v2119 = vld [vmem:[%s12 + $0x18] sm:$0xf]
    %v2120 = vld [vmem:[%s12 + $0x1c] sm:$0xf]
    %v2121 = vld [vmem:[%s12 + $0x20] sm:$0xf]
    %v2122 = vld [vmem:[%s12 + $0x24] sm:$0xf]
    %v2123 = vld [vmem:[%s12 + $0x28] sm:$0xf]
    %v2124 = vld [vmem:[%s12 + $0x2c] sm:$0xf]
    %v2125 = vld [vmem:[%s12 + $0x30] sm:$0xf]
    %v2126 = vld [vmem:[%s12 + $0x34] sm:$0xf]
    %v2127 = vld [vmem:[%s12 + $0x38] sm:$0xf]
    %v2128 = vld [vmem:[%s12 + $0x3c] sm:$0xf]
    %v2129 = vpack.c.bf16 %v2112, %v2112
    %v2130 = vlaneseq
    %v2131 = vshrl.u32 %v2130, 7
    %v2132 = vsub.s32 2, %v2131
    %v2133 = vrot.slane %v1816, %v2132
    %v2150 = vunpack.c.l.b16 %v2113
    %v2151 = vunpack.c.l.b16 %v2114
    %v2152 = vunpack.c.l.b16 %v2115
    %v2153 = vunpack.c.l.b16 %v2116
    %v2154 = vunpack.c.l.b16 %v2117
    %v2155 = vunpack.c.l.b16 %v2118
    %v2156 = vunpack.c.l.b16 %v2119
    %v2157 = vunpack.c.l.b16 %v2120
    %v2158 = vunpack.c.l.b16 %v2121
    %v2159 = vunpack.c.l.b16 %v2122
    %v2160 = vunpack.c.l.b16 %v2123
    %v2161 = vunpack.c.l.b16 %v2124
    %v2162 = vunpack.c.l.b16 %v2125
    %v2163 = vunpack.c.l.b16 %v2126
    %v2164 = vunpack.c.l.b16 %v2127
    %v2165 = vunpack.c.l.b16 %v2128
    %v2166 = vpack.c.b16 %v2151, %v2150
    %v2167 = vpack.c.b16 %v2153, %v2152
    %v2168 = vpack.c.b16 %v2155, %v2154
    %v2169 = vpack.c.b16 %v2157, %v2156
    %v2170 = vpack.c.b16 %v2159, %v2158
    %v2171 = vpack.c.b16 %v2161, %v2160
    %v2172 = vpack.c.b16 %v2163, %v2162
    %v2173 = vpack.c.b16 %v2165, %v2164
    %2182 = vmatprep.subr.bf16.mxu0 0
    %2183 = vmatpush1.bf16.msra.mxu0 %v2166
    %2184 = vmatprep.subr.bf16.mxu0 0
    %2185 = vmatpush1.bf16.msra.mxu0 %v2167
    %2186 = vmatprep.subr.bf16.mxu0 0
    %2187 = vmatpush1.bf16.msra.mxu0 %v2168
    %2188 = vmatprep.subr.bf16.mxu0 0
    %2189 = vmatpush1.bf16.msra.mxu0 %v2169
    %2190 = vmatprep.subr.bf16.mxu0 0
    %2191 = vmatpush1.bf16.msra.mxu0 %v2170
    %2192 = vmatprep.subr.bf16.mxu0 0
    %2193 = vmatpush1.bf16.msra.mxu0 %v2171
    %2194 = vmatprep.subr.bf16.mxu0 0
    %2195 = vmatpush1.bf16.msra.mxu0 %v2172
    %2196 = vmatprep.subr.bf16.mxu0 0
    %2197 = vmatpush1.bf16.msra.mxu0 %v2173
    %2198 = vmatprep.subr.bf16.mxu0 0
    %2199 = vmatpush1.bf16.msra.mxu0 0
    %2200 = vmatprep.subr.bf16.mxu0 0
    %2201 = vmatpush1.bf16.msra.mxu0 0
    %2202 = vmatprep.subr.bf16.mxu0 0
    %2203 = vmatpush1.bf16.msra.mxu0 0
    %2204 = vmatprep.subr.bf16.mxu0 0
    %2205 = vmatpush1.bf16.msra.mxu0 0
    %2206 = vmatprep.subr.bf16.mxu0 0
    %2207 = vmatpush1.bf16.msra.mxu0 0
    %2208 = vmatprep.subr.bf16.mxu0 0
    %2209 = vmatpush1.bf16.msra.mxu0 0
    %2210 = vmatprep.subr.bf16.mxu0 0
    %2211 = vmatpush1.bf16.msra.mxu0 0
    %2212 = vmatprep.subr.bf16.mxu0 0
    %2213 = vmatpush1.bf16.msra.mxu0 0
    %2214 = vmatprep.mubr.bf16.mxu0 0
    %2215 = vmatmul.mubr.bf16.gmra.mrb[0].mxu0 %v2129
    %v2216 = vpop.f32.mrb[0].mxu0
    %v2217 = vadd.f32 %v2133, %v2216
    %v2218 = vpop.f32.mrb[0].mxu0
    %v2219 = vpop.f32.mrb[0].mxu0
    %v2220 = vpop.f32.mrb[0].mxu0
    %2221 = vdwg.mxu0
    %2222 = vst [vmem:[#allocation3] sm:$0x3] %v2217
    // Predicated region
    $region58: #{spatiotemp_forward.1} parent=1 // pred_check
      _
    $region59: #{spatiotemp_forward.1} parent=1 // pred_check_branch
      %2224 = sbr.rel (0) target = $region61
    $region60: #{spatiotemp_forward.1} parent=1 // pred_region
      %s2226 = ssub.s32 32, 32
      %2227 = vsyncadd [#allocation4], %s2226
      %s2229 = sshll.u32 [#allocation3], 4
      %s2230 = int_to_ptr.vmem [resolvable:$true] %s2229
      %2232 = dma.vmem_to_hbm [thread:$0]  %s2230, 32, %s14, [#allocation4]
    $region61: #{spatiotemp_forward.1} parent=1 // pred_fallthru
      _
    // Predicated region
    $region62: #{spatiotemp_forward.1} parent=1 // pred_check
      _
    $region63: #{spatiotemp_forward.1} parent=1 // pred_check_branch
      %2234 = sbr.rel (0) target = $region65
    $region64: #{spatiotemp_forward.1} parent=1 // pred_region
      %2235 = dma.done [#allocation4], 32
    $region65: #{spatiotemp_forward.1} parent=1 // pred_fallthru
      _
    %2236 = vsyncpa [#allocation4], 1

</llo_original>
